<compile_context>
chip_gen: v7x
topology: tpu7x:2x2x1
jax: 0.10.0
libtpu: 0.0.40
codegen_flags: <defaults>
</compile_context>

<pallas_src>
import functools

import jax
import jax.numpy as jnp
import numpy as np
from jax.experimental import pallas as pl
from jax.experimental.pallas import tpu as pltpu


def _attn_block_kernel(x_ref, wq_ref, bq_ref, wk_ref, bk_ref, wv_ref, bv_ref,
                       wo_ref, bo_ref, w1_ref, b1_ref, w2_ref, b2_ref, o_ref,
                       *, batch_block, seq_len, num_heads, dim_head, eps):
    f32 = jnp.float32
    bf16 = jnp.bfloat16
    scale = dim_head ** -0.5
    N = seq_len

    x = x_ref[...].astype(f32)                       # (B_blk*N, C) flattened row slab

    # ---- LayerNorm 1 (no affine), f32 elementwise ----
    mu = jnp.mean(x, axis=-1, keepdims=True)
    var = jnp.mean((x - mu) ** 2, axis=-1, keepdims=True)
    h1 = (x - mu) * jax.lax.rsqrt(var + eps)
    h1_bf = h1.astype(bf16)                          # bf16 MXU operand, f32 accumulation below

    # ---- head-major q/k/v projections, computed on the full row slab ----
    q_heads, k_heads, v_heads = [], [], []
    for h in range(num_heads):                       # static unrolled head loop (leading-axis index)
        q_heads.append(jnp.dot(h1_bf, wq_ref[h], preferred_element_type=f32) + bq_ref[h])
        k_heads.append(jnp.dot(h1_bf, wk_ref[h], preferred_element_type=f32) + bk_ref[h])
        v_heads.append(jnp.dot(h1_bf, wv_ref[h], preferred_element_type=f32) + bv_ref[h])

    # ---- per-(batch, head) attention; out-projection accumulated per head (no concatenate) ----
    qk_dnums = (((1,), (1,)), ((), ()))              # q @ k^T
    pv_dnums = (((1,), (0,)), ((), ()))              # p @ v
    rows = []
    for b in range(batch_block):                     # static, sublane-aligned row chunks
        r0 = b * N
        acc_b = jnp.zeros((N, x.shape[-1]), f32)
        for h in range(num_heads):
            qb = q_heads[h][r0:r0 + N, :].astype(bf16)
            kb = k_heads[h][r0:r0 + N, :].astype(bf16)
            vb = v_heads[h][r0:r0 + N, :].astype(bf16)
            sim = jax.lax.dot_general(qb, kb, qk_dnums,
                                      preferred_element_type=f32) * scale      # (N, N) f32
            sim = sim - jnp.max(sim, axis=-1, keepdims=True)
            p = jnp.exp(sim)
            p = p * pl.reciprocal(jnp.sum(p, axis=-1, keepdims=True), approx=True)
            o_h = jax.lax.dot_general(p.astype(bf16), vb, pv_dnums,
                                      preferred_element_type=f32)               # (N, dh)
            acc_b = acc_b + jnp.dot(o_h.astype(bf16), wo_ref[h],
                                    preferred_element_type=f32)                 # (N, C)
        rows.append(acc_b)
    attn_out = jnp.concatenate(rows, axis=0) if batch_block > 1 else rows[0]

    x1 = x + attn_out + bo_ref[...]

    # ---- LayerNorm 2 (no affine) ----
    mu2 = jnp.mean(x1, axis=-1, keepdims=True)
    var2 = jnp.mean((x1 - mu2) ** 2, axis=-1, keepdims=True)
    h2 = (x1 - mu2) * jax.lax.rsqrt(var2 + eps)

    # ---- MLP: fc1 -> gelu(tanh) -> fc2 (bf16 MXU operands, f32 elementwise) ----
    f1 = jnp.dot(h2.astype(bf16), w1_ref[...], preferred_element_type=f32) + b1_ref[...]
    g = jax.nn.gelu(f1, approximate=True)            # matches nn.GELU(approximate='tanh')
    f2 = jnp.dot(g.astype(bf16), w2_ref[...], preferred_element_type=f32) + b2_ref[...]

    o_ref[...] = (x1 + f2).astype(o_ref.dtype)


def attn_block_pallas(x, params, *, num_heads, dim_head, batch_block=None):
    """x: (B, N, C) float32.

    params (math-layout, i.e. already-transposed PyTorch Linear weights):
      wq (C, D), bq (1, D), wkv (C, 2D), bkv (1, 2D), wo (D, C), bo (1, C),
      w1 (C, Dm), b1 (1, Dm), w2 (Dm, C), b2 (1, C), with D = num_heads * dim_head.
    """
    B, N, C = x.shape
    H, dh = num_heads, dim_head
    D = H * dh
    Dm = params['w1'].shape[1]
    f32, bf16 = jnp.float32, jnp.bfloat16

    bb = B if batch_block is None else batch_block   # default: whole batch in one grid step
    assert B % bb == 0, "batch_block must divide B"
    grid = (B // bb,)

    # --- wrapper-side layout plumbing (one time): head-major weights, bf16 MXU operands ---
    wq = jnp.asarray(params['wq'], f32).reshape(C, H, dh).transpose(1, 0, 2).astype(bf16)      # (H, C, dh)
    wk = jnp.asarray(params['wkv'][:, :D], f32).reshape(C, H, dh).transpose(1, 0, 2).astype(bf16)
    wv = jnp.asarray(params['wkv'][:, D:], f32).reshape(C, H, dh).transpose(1, 0, 2).astype(bf16)
    bq = jnp.asarray(params['bq'], f32).reshape(H, 1, dh)
    bk = jnp.asarray(params['bkv'][:, :D], f32).reshape(H, 1, dh)
    bv = jnp.asarray(params['bkv'][:, D:], f32).reshape(H, 1, dh)
    wo = jnp.asarray(params['wo'], f32).reshape(H, dh, C).astype(bf16)                          # (H, dh, C)
    bo = jnp.asarray(params['bo'], f32)
    w1 = jnp.asarray(params['w1'], f32).astype(bf16)
    b1 = jnp.asarray(params['b1'], f32)
    w2 = jnp.asarray(params['w2'], f32).astype(bf16)
    b2 = jnp.asarray(params['b2'], f32)

    x2d = x.reshape(B * N, C)                        # flatten rows in the wrapper (free)

    kernel = functools.partial(_attn_block_kernel, batch_block=bb, seq_len=N,
                               num_heads=H, dim_head=dh, eps=1e-6)

    def full(shape):
        nd = len(shape)
        return pl.BlockSpec(shape, lambda b, _n=nd: (0,) * _n)

    out2d = pl.pallas_call(
        kernel,
        out_shape=jax.ShapeDtypeStruct((B * N, C), x.dtype),
        grid_spec=pltpu.PrefetchScalarGridSpec(
            num_scalar_prefetch=0,
            grid=grid,
            in_specs=[
                pl.BlockSpec((bb * N, C), lambda b: (b, 0)),   # x rows: one batch-block per step
                full((H, C, dh)), full((H, 1, dh)),            # wq, bq
                full((H, C, dh)), full((H, 1, dh)),            # wk, bk
                full((H, C, dh)), full((H, 1, dh)),            # wv, bv
                full((H, dh, C)), full((1, C)),                # wo, bo
                full((C, Dm)),    full((1, Dm)),               # w1, b1
                full((Dm, C)),    full((1, C)),                # w2, b2
            ],
            out_specs=pl.BlockSpec((bb * N, C), lambda b: (b, 0)),
        ),
        compiler_params=pltpu.CompilerParams(
            dimension_semantics=("parallel",)),      # batch-blocks independent -> v7x dual-TC
    )(x2d, wq, bq, wk, bk, wv, bv, wo, bo, w1, b1, w2, b2)

    return out2d.reshape(B, N, C)


def _reference(x, params, *, num_heads, dim_head, eps=1e-6):
    # pure-JAX f32 reference mirroring the PyTorch forward (mask=None, non-flash path since N<64)
    D = num_heads * dim_head
    scale = dim_head ** -0.5

    def ln(v):
        mu = jnp.mean(v, axis=-1, keepdims=True)
        var = jnp.mean((v - mu) ** 2, axis=-1, keepdims=True)
        return (v - mu) / jnp.sqrt(var + eps)

    B, N, C = x.shape
    h1 = ln(x)
    q = h1 @ params['wq'] + params['bq']
    kv = h1 @ params['wkv'] + params['bkv']
    k, v = kv[..., :D], kv[..., D:]
    q = q.reshape(B, N, num_heads, dim_head).transpose(0, 2, 1, 3)
    k = k.reshape(B, N, num_heads, dim_head).transpose(0, 2, 1, 3)
    v = v.reshape(B, N, num_heads, dim_head).transpose(0, 2, 1, 3)
    sim = jnp.einsum('bhnd,bhmd->bhnm', q, k) * scale
    attn = jax.nn.softmax(sim, axis=-1)
    o = jnp.einsum('bhnm,bhmd->bhnd', attn, v).transpose(0, 2, 1, 3).reshape(B, N, D)
    x1 = x + (o @ params['wo'] + params['bo'])
    h2 = ln(x1)
    f = jax.nn.gelu(h2 @ params['w1'] + params['b1'], approximate=True)
    return x1 + (f @ params['w2'] + params['b2'])


if __name__ == "__main__":
    # AttnBlock(hidden_size=32, num_heads=2) -> Attention dim_head stays at its default 48,
    # mlp_ratio=4 -> mlp_hidden=128.  x: (B=2, N=8, C=32)  (N<64 => non-flash math path).
    B, N, C = 2, 8, 32
    num_heads, dim_head = 2, 48
    D = num_heads * dim_head
    Dm = int(C * 4.0)

    key = jax.random.PRNGKey(0)
    keys = jax.random.split(key, 12)

    def init(k, shape, scale=0.05):
        return (scale * jax.random.normal(k, shape)).astype(jnp.float32)

    x = init(keys[0], (B, N, C), scale=1.0)
    params = {
        'wq':  init(keys[1], (C, D)),
        'bq':  init(keys[2], (1, D)),
        'wkv': init(keys[3], (C, 2 * D)),
        'bkv': init(keys[4], (1, 2 * D)),
        'wo':  init(keys[5], (D, C)),
        'bo':  init(keys[6], (1, C)),
        'w1':  init(keys[7], (C, Dm)),
        'b1':  init(keys[8], (1, Dm)),
        'w2':  init(keys[9], (Dm, C)),
        'b2':  init(keys[10], (1, C)),
    }

    out = attn_block_pallas(x, params, num_heads=num_heads, dim_head=dim_head)
    out = jax.block_until_ready(out)

    ref = _reference(x, params, num_heads=num_heads, dim_head=dim_head)
    # Tolerance loosened vs the pure-f32 version: bf16 MXU operands + approx-reciprocal softmax
    # (both requested by the perf review) introduce ~1e-3-level deviations from the f32 reference.
    np.testing.assert_allclose(np.asarray(out), np.asarray(ref), rtol=2e-2, atol=2e-2)

    print("KERNEL_OK")
</pallas_src>

<mosaic_0001>
module attributes {stable_mosaic.version = 11 : i64} {
  func.func @_attn_block_kernel(%arg0: i32, %arg1: memref<16x32xf32, #tpu.memory_space<vmem>>, %arg2: memref<2x32x48xbf16, #tpu.memory_space<vmem>>, %arg3: memref<2x1x48xf32, #tpu.memory_space<vmem>>, %arg4: memref<2x32x48xbf16, #tpu.memory_space<vmem>>, %arg5: memref<2x1x48xf32, #tpu.memory_space<vmem>>, %arg6: memref<2x32x48xbf16, #tpu.memory_space<vmem>>, %arg7: memref<2x1x48xf32, #tpu.memory_space<vmem>>, %arg8: memref<2x48x32xbf16, #tpu.memory_space<vmem>>, %arg9: memref<1x32xf32, #tpu.memory_space<vmem>>, %arg10: memref<32x128xbf16, #tpu.memory_space<vmem>>, %arg11: memref<1x128xf32, #tpu.memory_space<vmem>>, %arg12: memref<128x32xbf16, #tpu.memory_space<vmem>>, %arg13: memref<1x32xf32, #tpu.memory_space<vmem>>, %arg14: memref<16x32xf32, #tpu.memory_space<vmem>>) attributes {dimension_semantics = [#tpu.dimension_semantics<parallel>], iteration_bounds = array<i64: 1>, scalar_prefetch = 0 : i64, scratch_operands = 0 : i64, tpu.core_type = #tpu.core_type<tc>, window_params = [{transform_indices = @transform_0, window_bounds = array<i64: 16, 32>}, {pipeline_mode = #tpu.pipeline_mode<synchronous>, transform_indices = @transform_1, window_bounds = array<i64: 2, 32, 48>}, {pipeline_mode = #tpu.pipeline_mode<synchronous>, transform_indices = @transform_2, window_bounds = array<i64: 2, 1, 48>}, {pipeline_mode = #tpu.pipeline_mode<synchronous>, transform_indices = @transform_3, window_bounds = array<i64: 2, 32, 48>}, {pipeline_mode = #tpu.pipeline_mode<synchronous>, transform_indices = @transform_4, window_bounds = array<i64: 2, 1, 48>}, {pipeline_mode = #tpu.pipeline_mode<synchronous>, transform_indices = @transform_5, window_bounds = array<i64: 2, 32, 48>}, {pipeline_mode = #tpu.pipeline_mode<synchronous>, transform_indices = @transform_6, window_bounds = array<i64: 2, 1, 48>}, {pipeline_mode = #tpu.pipeline_mode<synchronous>, transform_indices = @transform_7, window_bounds = array<i64: 2, 48, 32>}, {pipeline_mode = #tpu.pipeline_mode<synchronous>, transform_indices = @transform_8, window_bounds = array<i64: 1, 32>}, {pipeline_mode = #tpu.pipeline_mode<synchronous>, transform_indices = @transform_9, window_bounds = array<i64: 32, 128>}, {pipeline_mode = #tpu.pipeline_mode<synchronous>, transform_indices = @transform_10, window_bounds = array<i64: 1, 128>}, {pipeline_mode = #tpu.pipeline_mode<synchronous>, transform_indices = @transform_11, window_bounds = array<i64: 128, 32>}, {pipeline_mode = #tpu.pipeline_mode<synchronous>, transform_indices = @transform_12, window_bounds = array<i64: 1, 32>}, {transform_indices = @transform_13, window_bounds = array<i64: 16, 32>}]} {
    %c0 = arith.constant 0 : index
    %c0_0 = arith.constant 0 : index
    %0 = vector.load %arg1[%c0, %c0_0] : memref<16x32xf32, #tpu.memory_space<vmem>>, vector<16x32xf32>
    %cst = arith.constant dense<0.000000e+00> : vector<16xf32>
    %1 = vector.multi_reduction <add>, %0, %cst [1] : vector<16x32xf32> to vector<16xf32>
    %2 = vector.shape_cast %1 : vector<16xf32> to vector<16x1xf32>
    %cst_1 = arith.constant 3.200000e+01 : f32
    %3 = vector.broadcast %cst_1 : f32 to vector<16x1xf32>
    %4 = arith.divf %2, %3 : vector<16x1xf32>
    %5 = vector.broadcast %4 : vector<16x1xf32> to vector<16x32xf32>
    %6 = arith.subf %0, %5 : vector<16x32xf32>
    %7 = arith.mulf %6, %6 : vector<16x32xf32>
    %cst_2 = arith.constant dense<0.000000e+00> : vector<16xf32>
    %8 = vector.multi_reduction <add>, %7, %cst_2 [1] : vector<16x32xf32> to vector<16xf32>
    %9 = vector.shape_cast %8 : vector<16xf32> to vector<16x1xf32>
    %cst_3 = arith.constant 3.200000e+01 : f32
    %10 = vector.broadcast %cst_3 : f32 to vector<16x1xf32>
    %11 = arith.divf %9, %10 : vector<16x1xf32>
    %12 = vector.broadcast %4 : vector<16x1xf32> to vector<16x32xf32>
    %13 = arith.subf %0, %12 : vector<16x32xf32>
    %cst_4 = arith.constant 9.99999997E-7 : f32
    %14 = vector.broadcast %cst_4 : f32 to vector<16x1xf32>
    %15 = arith.addf %11, %14 : vector<16x1xf32>
    %16 = math.rsqrt %15 : vector<16x1xf32>
    %17 = vector.broadcast %16 : vector<16x1xf32> to vector<16x32xf32>
    %18 = arith.mulf %13, %17 : vector<16x32xf32>
    %19 = arith.truncf %18 : vector<16x32xf32> to vector<16x32xbf16>
    %c0_5 = arith.constant 0 : index
    %c0_6 = arith.constant 0 : index
    %c0_7 = arith.constant 0 : index
    %20 = vector.load %arg2[%c0_5, %c0_6, %c0_7] : memref<2x32x48xbf16, #tpu.memory_space<vmem>>, vector<1x32x48xbf16>
    %21 = vector.shape_cast %20 : vector<1x32x48xbf16> to vector<32x48xbf16>
    %cst_8 = arith.constant dense<0.000000e+00> : vector<16x48xf32>
    %22 = tpu.matmul %19, %21, %cst_8 {dimension_numbers = #tpu.dot_dimension_numbers<[1], [0], [0], [1], [0, 0, 1, 1], [], []>} : vector<16x32xbf16>, vector<32x48xbf16>, vector<16x48xf32> -> vector<16x48xf32>
    %c0_9 = arith.constant 0 : index
    %c0_10 = arith.constant 0 : index
    %c0_11 = arith.constant 0 : index
    %23 = vector.load %arg3[%c0_9, %c0_10, %c0_11] : memref<2x1x48xf32, #tpu.memory_space<vmem>>, vector<1x1x48xf32>
    %24 = vector.shape_cast %23 : vector<1x1x48xf32> to vector<1x48xf32>
    %25 = vector.broadcast %24 : vector<1x48xf32> to vector<16x48xf32>
    %26 = arith.addf %22, %25 : vector<16x48xf32>
    %c0_12 = arith.constant 0 : index
    %c0_13 = arith.constant 0 : index
    %c0_14 = arith.constant 0 : index
    %27 = vector.load %arg4[%c0_12, %c0_13, %c0_14] : memref<2x32x48xbf16, #tpu.memory_space<vmem>>, vector<1x32x48xbf16>
    %28 = vector.shape_cast %27 : vector<1x32x48xbf16> to vector<32x48xbf16>
    %cst_15 = arith.constant dense<0.000000e+00> : vector<16x48xf32>
    %29 = tpu.matmul %19, %28, %cst_15 {dimension_numbers = #tpu.dot_dimension_numbers<[1], [0], [0], [1], [0, 0, 1, 1], [], []>} : vector<16x32xbf16>, vector<32x48xbf16>, vector<16x48xf32> -> vector<16x48xf32>
    %c0_16 = arith.constant 0 : index
    %c0_17 = arith.constant 0 : index
    %c0_18 = arith.constant 0 : index
    %30 = vector.load %arg5[%c0_16, %c0_17, %c0_18] : memref<2x1x48xf32, #tpu.memory_space<vmem>>, vector<1x1x48xf32>
    %31 = vector.shape_cast %30 : vector<1x1x48xf32> to vector<1x48xf32>
    %32 = vector.broadcast %31 : vector<1x48xf32> to vector<16x48xf32>
    %33 = arith.addf %29, %32 : vector<16x48xf32>
    %c0_19 = arith.constant 0 : index
    %c0_20 = arith.constant 0 : index
    %c0_21 = arith.constant 0 : index
    %34 = vector.load %arg6[%c0_19, %c0_20, %c0_21] : memref<2x32x48xbf16, #tpu.memory_space<vmem>>, vector<1x32x48xbf16>
    %35 = vector.shape_cast %34 : vector<1x32x48xbf16> to vector<32x48xbf16>
    %cst_22 = arith.constant dense<0.000000e+00> : vector<16x48xf32>
    %36 = tpu.matmul %19, %35, %cst_22 {dimension_numbers = #tpu.dot_dimension_numbers<[1], [0], [0], [1], [0, 0, 1, 1], [], []>} : vector<16x32xbf16>, vector<32x48xbf16>, vector<16x48xf32> -> vector<16x48xf32>
    %c0_23 = arith.constant 0 : index
    %c0_24 = arith.constant 0 : index
    %c0_25 = arith.constant 0 : index
    %37 = vector.load %arg7[%c0_23, %c0_24, %c0_25] : memref<2x1x48xf32, #tpu.memory_space<vmem>>, vector<1x1x48xf32>
    %38 = vector.shape_cast %37 : vector<1x1x48xf32> to vector<1x48xf32>
    %39 = vector.broadcast %38 : vector<1x48xf32> to vector<16x48xf32>
    %40 = arith.addf %36, %39 : vector<16x48xf32>
    %c1 = arith.constant 1 : index
    %c0_26 = arith.constant 0 : index
    %c0_27 = arith.constant 0 : index
    %41 = vector.load %arg2[%c1, %c0_26, %c0_27] : memref<2x32x48xbf16, #tpu.memory_space<vmem>>, vector<1x32x48xbf16>
    %42 = vector.shape_cast %41 : vector<1x32x48xbf16> to vector<32x48xbf16>
    %cst_28 = arith.constant dense<0.000000e+00> : vector<16x48xf32>
    %43 = tpu.matmul %19, %42, %cst_28 {dimension_numbers = #tpu.dot_dimension_numbers<[1], [0], [0], [1], [0, 0, 1, 1], [], []>} : vector<16x32xbf16>, vector<32x48xbf16>, vector<16x48xf32> -> vector<16x48xf32>
    %c1_29 = arith.constant 1 : index
    %c0_30 = arith.constant 0 : index
    %c0_31 = arith.constant 0 : index
    %44 = vector.load %arg3[%c1_29, %c0_30, %c0_31] : memref<2x1x48xf32, #tpu.memory_space<vmem>>, vector<1x1x48xf32>
    %45 = vector.shape_cast %44 : vector<1x1x48xf32> to vector<1x48xf32>
    %46 = vector.broadcast %45 : vector<1x48xf32> to vector<16x48xf32>
    %47 = arith.addf %43, %46 : vector<16x48xf32>
    %c1_32 = arith.constant 1 : index
    %c0_33 = arith.constant 0 : index
    %c0_34 = arith.constant 0 : index
    %48 = vector.load %arg4[%c1_32, %c0_33, %c0_34] : memref<2x32x48xbf16, #tpu.memory_space<vmem>>, vector<1x32x48xbf16>
    %49 = vector.shape_cast %48 : vector<1x32x48xbf16> to vector<32x48xbf16>
    %cst_35 = arith.constant dense<0.000000e+00> : vector<16x48xf32>
    %50 = tpu.matmul %19, %49, %cst_35 {dimension_numbers = #tpu.dot_dimension_numbers<[1], [0], [0], [1], [0, 0, 1, 1], [], []>} : vector<16x32xbf16>, vector<32x48xbf16>, vector<16x48xf32> -> vector<16x48xf32>
    %c1_36 = arith.constant 1 : index
    %c0_37 = arith.constant 0 : index
    %c0_38 = arith.constant 0 : index
    %51 = vector.load %arg5[%c1_36, %c0_37, %c0_38] : memref<2x1x48xf32, #tpu.memory_space<vmem>>, vector<1x1x48xf32>
    %52 = vector.shape_cast %51 : vector<1x1x48xf32> to vector<1x48xf32>
    %53 = vector.broadcast %52 : vector<1x48xf32> to vector<16x48xf32>
    %54 = arith.addf %50, %53 : vector<16x48xf32>
    %c1_39 = arith.constant 1 : index
    %c0_40 = arith.constant 0 : index
    %c0_41 = arith.constant 0 : index
    %55 = vector.load %arg6[%c1_39, %c0_40, %c0_41] : memref<2x32x48xbf16, #tpu.memory_space<vmem>>, vector<1x32x48xbf16>
    %56 = vector.shape_cast %55 : vector<1x32x48xbf16> to vector<32x48xbf16>
    %cst_42 = arith.constant dense<0.000000e+00> : vector<16x48xf32>
    %57 = tpu.matmul %19, %56, %cst_42 {dimension_numbers = #tpu.dot_dimension_numbers<[1], [0], [0], [1], [0, 0, 1, 1], [], []>} : vector<16x32xbf16>, vector<32x48xbf16>, vector<16x48xf32> -> vector<16x48xf32>
    %c1_43 = arith.constant 1 : index
    %c0_44 = arith.constant 0 : index
    %c0_45 = arith.constant 0 : index
    %58 = vector.load %arg7[%c1_43, %c0_44, %c0_45] : memref<2x1x48xf32, #tpu.memory_space<vmem>>, vector<1x1x48xf32>
    %59 = vector.shape_cast %58 : vector<1x1x48xf32> to vector<1x48xf32>
    %60 = vector.broadcast %59 : vector<1x48xf32> to vector<16x48xf32>
    %61 = arith.addf %57, %60 : vector<16x48xf32>
    %cst_46 = arith.constant 0.000000e+00 : f32
    %62 = vector.broadcast %cst_46 : f32 to vector<8x32xf32>
    %63 = vector.extract_strided_slice %26 {offsets = [0, 0], sizes = [8, 48], strides = [1, 1]} : vector<16x48xf32> to vector<8x48xf32>
    %64 = arith.truncf %63 : vector<8x48xf32> to vector<8x48xbf16>
    %65 = vector.extract_strided_slice %33 {offsets = [0, 0], sizes = [8, 48], strides = [1, 1]} : vector<16x48xf32> to vector<8x48xf32>
    %66 = arith.truncf %65 : vector<8x48xf32> to vector<8x48xbf16>
    %67 = vector.extract_strided_slice %40 {offsets = [0, 0], sizes = [8, 48], strides = [1, 1]} : vector<16x48xf32> to vector<8x48xf32>
    %68 = arith.truncf %67 : vector<8x48xf32> to vector<8x48xbf16>
    %cst_47 = arith.constant dense<0.000000e+00> : vector<8x8xf32>
    %69 = tpu.matmul %64, %66, %cst_47 {dimension_numbers = #tpu.dot_dimension_numbers<[1], [1], [0], [0], [0, 0, 1, 0], [], []>} : vector<8x48xbf16>, vector<8x48xbf16>, vector<8x8xf32> -> vector<8x8xf32>
    %cst_48 = arith.constant 0.144337565 : f32
    %70 = vector.broadcast %cst_48 : f32 to vector<8x8xf32>
    %71 = arith.mulf %69, %70 : vector<8x8xf32>
    %cst_49 = arith.constant dense<0xFF800000> : vector<8xf32>
    %72 = vector.multi_reduction <maximumf>, %71, %cst_49 [1] : vector<8x8xf32> to vector<8xf32>
    %73 = vector.shape_cast %72 : vector<8xf32> to vector<8x1xf32>
    %74 = vector.broadcast %73 : vector<8x1xf32> to vector<8x8xf32>
    %75 = arith.subf %71, %74 : vector<8x8xf32>
    %76 = math.exp %75 : vector<8x8xf32>
    %cst_50 = arith.constant dense<0.000000e+00> : vector<8xf32>
    %77 = vector.multi_reduction <add>, %76, %cst_50 [1] : vector<8x8xf32> to vector<8xf32>
    %78 = vector.shape_cast %77 : vector<8xf32> to vector<8x1xf32>
    %79 = tpu.reciprocal %78 {approx = true} : vector<8x1xf32> -> vector<8x1xf32>
    %80 = vector.broadcast %79 : vector<8x1xf32> to vector<8x8xf32>
    %81 = arith.mulf %76, %80 : vector<8x8xf32>
    %82 = arith.truncf %81 : vector<8x8xf32> to vector<8x8xbf16>
    %cst_51 = arith.constant dense<0.000000e+00> : vector<8x48xf32>
    %83 = tpu.matmul %82, %68, %cst_51 {dimension_numbers = #tpu.dot_dimension_numbers<[1], [0], [0], [1], [0, 0, 1, 1], [], []>} : vector<8x8xbf16>, vector<8x48xbf16>, vector<8x48xf32> -> vector<8x48xf32>
    %84 = arith.truncf %83 : vector<8x48xf32> to vector<8x48xbf16>
    %c0_52 = arith.constant 0 : index
    %c0_53 = arith.constant 0 : index
    %c0_54 = arith.constant 0 : index
    %85 = vector.load %arg8[%c0_52, %c0_53, %c0_54] : memref<2x48x32xbf16, #tpu.memory_space<vmem>>, vector<1x48x32xbf16>
    %86 = vector.shape_cast %85 : vector<1x48x32xbf16> to vector<48x32xbf16>
    %cst_55 = arith.constant dense<0.000000e+00> : vector<8x32xf32>
    %87 = tpu.matmul %84, %86, %cst_55 {dimension_numbers = #tpu.dot_dimension_numbers<[1], [0], [0], [1], [0, 0, 1, 1], [], []>} : vector<8x48xbf16>, vector<48x32xbf16>, vector<8x32xf32> -> vector<8x32xf32>
    %88 = arith.addf %62, %87 : vector<8x32xf32>
    %89 = vector.extract_strided_slice %47 {offsets = [0, 0], sizes = [8, 48], strides = [1, 1]} : vector<16x48xf32> to vector<8x48xf32>
    %90 = arith.truncf %89 : vector<8x48xf32> to vector<8x48xbf16>
    %91 = vector.extract_strided_slice %54 {offsets = [0, 0], sizes = [8, 48], strides = [1, 1]} : vector<16x48xf32> to vector<8x48xf32>
    %92 = arith.truncf %91 : vector<8x48xf32> to vector<8x48xbf16>
    %93 = vector.extract_strided_slice %61 {offsets = [0, 0], sizes = [8, 48], strides = [1, 1]} : vector<16x48xf32> to vector<8x48xf32>
    %94 = arith.truncf %93 : vector<8x48xf32> to vector<8x48xbf16>
    %cst_56 = arith.constant dense<0.000000e+00> : vector<8x8xf32>
    %95 = tpu.matmul %90, %92, %cst_56 {dimension_numbers = #tpu.dot_dimension_numbers<[1], [1], [0], [0], [0, 0, 1, 0], [], []>} : vector<8x48xbf16>, vector<8x48xbf16>, vector<8x8xf32> -> vector<8x8xf32>
    %cst_57 = arith.constant 0.144337565 : f32
    %96 = vector.broadcast %cst_57 : f32 to vector<8x8xf32>
    %97 = arith.mulf %95, %96 : vector<8x8xf32>
    %cst_58 = arith.constant dense<0xFF800000> : vector<8xf32>
    %98 = vector.multi_reduction <maximumf>, %97, %cst_58 [1] : vector<8x8xf32> to vector<8xf32>
    %99 = vector.shape_cast %98 : vector<8xf32> to vector<8x1xf32>
    %100 = vector.broadcast %99 : vector<8x1xf32> to vector<8x8xf32>
    %101 = arith.subf %97, %100 : vector<8x8xf32>
    %102 = math.exp %101 : vector<8x8xf32>
    %cst_59 = arith.constant dense<0.000000e+00> : vector<8xf32>
    %103 = vector.multi_reduction <add>, %102, %cst_59 [1] : vector<8x8xf32> to vector<8xf32>
    %104 = vector.shape_cast %103 : vector<8xf32> to vector<8x1xf32>
    %105 = tpu.reciprocal %104 {approx = true} : vector<8x1xf32> -> vector<8x1xf32>
    %106 = vector.broadcast %105 : vector<8x1xf32> to vector<8x8xf32>
    %107 = arith.mulf %102, %106 : vector<8x8xf32>
    %108 = arith.truncf %107 : vector<8x8xf32> to vector<8x8xbf16>
    %cst_60 = arith.constant dense<0.000000e+00> : vector<8x48xf32>
    %109 = tpu.matmul %108, %94, %cst_60 {dimension_numbers = #tpu.dot_dimension_numbers<[1], [0], [0], [1], [0, 0, 1, 1], [], []>} : vector<8x8xbf16>, vector<8x48xbf16>, vector<8x48xf32> -> vector<8x48xf32>
    %110 = arith.truncf %109 : vector<8x48xf32> to vector<8x48xbf16>
    %c1_61 = arith.constant 1 : index
    %c0_62 = arith.constant 0 : index
    %c0_63 = arith.constant 0 : index
    %111 = vector.load %arg8[%c1_61, %c0_62, %c0_63] : memref<2x48x32xbf16, #tpu.memory_space<vmem>>, vector<1x48x32xbf16>
    %112 = vector.shape_cast %111 : vector<1x48x32xbf16> to vector<48x32xbf16>
    %cst_64 = arith.constant dense<0.000000e+00> : vector<8x32xf32>
    %113 = tpu.matmul %110, %112, %cst_64 {dimension_numbers = #tpu.dot_dimension_numbers<[1], [0], [0], [1], [0, 0, 1, 1], [], []>} : vector<8x48xbf16>, vector<48x32xbf16>, vector<8x32xf32> -> vector<8x32xf32>
    %114 = arith.addf %88, %113 : vector<8x32xf32>
    %cst_65 = arith.constant 0.000000e+00 : f32
    %115 = vector.broadcast %cst_65 : f32 to vector<8x32xf32>
    %116 = vector.extract_strided_slice %26 {offsets = [8, 0], sizes = [8, 48], strides = [1, 1]} : vector<16x48xf32> to vector<8x48xf32>
    %117 = arith.truncf %116 : vector<8x48xf32> to vector<8x48xbf16>
    %118 = vector.extract_strided_slice %33 {offsets = [8, 0], sizes = [8, 48], strides = [1, 1]} : vector<16x48xf32> to vector<8x48xf32>
    %119 = arith.truncf %118 : vector<8x48xf32> to vector<8x48xbf16>
    %120 = vector.extract_strided_slice %40 {offsets = [8, 0], sizes = [8, 48], strides = [1, 1]} : vector<16x48xf32> to vector<8x48xf32>
    %121 = arith.truncf %120 : vector<8x48xf32> to vector<8x48xbf16>
    %cst_66 = arith.constant dense<0.000000e+00> : vector<8x8xf32>
    %122 = tpu.matmul %117, %119, %cst_66 {dimension_numbers = #tpu.dot_dimension_numbers<[1], [1], [0], [0], [0, 0, 1, 0], [], []>} : vector<8x48xbf16>, vector<8x48xbf16>, vector<8x8xf32> -> vector<8x8xf32>
    %cst_67 = arith.constant 0.144337565 : f32
    %123 = vector.broadcast %cst_67 : f32 to vector<8x8xf32>
    %124 = arith.mulf %122, %123 : vector<8x8xf32>
    %cst_68 = arith.constant dense<0xFF800000> : vector<8xf32>
    %125 = vector.multi_reduction <maximumf>, %124, %cst_68 [1] : vector<8x8xf32> to vector<8xf32>
    %126 = vector.shape_cast %125 : vector<8xf32> to vector<8x1xf32>
    %127 = vector.broadcast %126 : vector<8x1xf32> to vector<8x8xf32>
    %128 = arith.subf %124, %127 : vector<8x8xf32>
    %129 = math.exp %128 : vector<8x8xf32>
    %cst_69 = arith.constant dense<0.000000e+00> : vector<8xf32>
    %130 = vector.multi_reduction <add>, %129, %cst_69 [1] : vector<8x8xf32> to vector<8xf32>
    %131 = vector.shape_cast %130 : vector<8xf32> to vector<8x1xf32>
    %132 = tpu.reciprocal %131 {approx = true} : vector<8x1xf32> -> vector<8x1xf32>
    %133 = vector.broadcast %132 : vector<8x1xf32> to vector<8x8xf32>
    %134 = arith.mulf %129, %133 : vector<8x8xf32>
    %135 = arith.truncf %134 : vector<8x8xf32> to vector<8x8xbf16>
    %cst_70 = arith.constant dense<0.000000e+00> : vector<8x48xf32>
    %136 = tpu.matmul %135, %121, %cst_70 {dimension_numbers = #tpu.dot_dimension_numbers<[1], [0], [0], [1], [0, 0, 1, 1], [], []>} : vector<8x8xbf16>, vector<8x48xbf16>, vector<8x48xf32> -> vector<8x48xf32>
    %137 = arith.truncf %136 : vector<8x48xf32> to vector<8x48xbf16>
    %c0_71 = arith.constant 0 : index
    %c0_72 = arith.constant 0 : index
    %c0_73 = arith.constant 0 : index
    %138 = vector.load %arg8[%c0_71, %c0_72, %c0_73] : memref<2x48x32xbf16, #tpu.memory_space<vmem>>, vector<1x48x32xbf16>
    %139 = vector.shape_cast %138 : vector<1x48x32xbf16> to vector<48x32xbf16>
    %cst_74 = arith.constant dense<0.000000e+00> : vector<8x32xf32>
    %140 = tpu.matmul %137, %139, %cst_74 {dimension_numbers = #tpu.dot_dimension_numbers<[1], [0], [0], [1], [0, 0, 1, 1], [], []>} : vector<8x48xbf16>, vector<48x32xbf16>, vector<8x32xf32> -> vector<8x32xf32>
    %141 = arith.addf %115, %140 : vector<8x32xf32>
    %142 = vector.extract_strided_slice %47 {offsets = [8, 0], sizes = [8, 48], strides = [1, 1]} : vector<16x48xf32> to vector<8x48xf32>
    %143 = arith.truncf %142 : vector<8x48xf32> to vector<8x48xbf16>
    %144 = vector.extract_strided_slice %54 {offsets = [8, 0], sizes = [8, 48], strides = [1, 1]} : vector<16x48xf32> to vector<8x48xf32>
    %145 = arith.truncf %144 : vector<8x48xf32> to vector<8x48xbf16>
    %146 = vector.extract_strided_slice %61 {offsets = [8, 0], sizes = [8, 48], strides = [1, 1]} : vector<16x48xf32> to vector<8x48xf32>
    %147 = arith.truncf %146 : vector<8x48xf32> to vector<8x48xbf16>
    %cst_75 = arith.constant dense<0.000000e+00> : vector<8x8xf32>
    %148 = tpu.matmul %143, %145, %cst_75 {dimension_numbers = #tpu.dot_dimension_numbers<[1], [1], [0], [0], [0, 0, 1, 0], [], []>} : vector<8x48xbf16>, vector<8x48xbf16>, vector<8x8xf32> -> vector<8x8xf32>
    %cst_76 = arith.constant 0.144337565 : f32
    %149 = vector.broadcast %cst_76 : f32 to vector<8x8xf32>
    %150 = arith.mulf %148, %149 : vector<8x8xf32>
    %cst_77 = arith.constant dense<0xFF800000> : vector<8xf32>
    %151 = vector.multi_reduction <maximumf>, %150, %cst_77 [1] : vector<8x8xf32> to vector<8xf32>
    %152 = vector.shape_cast %151 : vector<8xf32> to vector<8x1xf32>
    %153 = vector.broadcast %152 : vector<8x1xf32> to vector<8x8xf32>
    %154 = arith.subf %150, %153 : vector<8x8xf32>
    %155 = math.exp %154 : vector<8x8xf32>
    %cst_78 = arith.constant dense<0.000000e+00> : vector<8xf32>
    %156 = vector.multi_reduction <add>, %155, %cst_78 [1] : vector<8x8xf32> to vector<8xf32>
    %157 = vector.shape_cast %156 : vector<8xf32> to vector<8x1xf32>
    %158 = tpu.reciprocal %157 {approx = true} : vector<8x1xf32> -> vector<8x1xf32>
    %159 = vector.broadcast %158 : vector<8x1xf32> to vector<8x8xf32>
    %160 = arith.mulf %155, %159 : vector<8x8xf32>
    %161 = arith.truncf %160 : vector<8x8xf32> to vector<8x8xbf16>
    %cst_79 = arith.constant dense<0.000000e+00> : vector<8x48xf32>
    %162 = tpu.matmul %161, %147, %cst_79 {dimension_numbers = #tpu.dot_dimension_numbers<[1], [0], [0], [1], [0, 0, 1, 1], [], []>} : vector<8x8xbf16>, vector<8x48xbf16>, vector<8x48xf32> -> vector<8x48xf32>
    %163 = arith.truncf %162 : vector<8x48xf32> to vector<8x48xbf16>
    %c1_80 = arith.constant 1 : index
    %c0_81 = arith.constant 0 : index
    %c0_82 = arith.constant 0 : index
    %164 = vector.load %arg8[%c1_80, %c0_81, %c0_82] : memref<2x48x32xbf16, #tpu.memory_space<vmem>>, vector<1x48x32xbf16>
    %165 = vector.shape_cast %164 : vector<1x48x32xbf16> to vector<48x32xbf16>
    %cst_83 = arith.constant dense<0.000000e+00> : vector<8x32xf32>
    %166 = tpu.matmul %163, %165, %cst_83 {dimension_numbers = #tpu.dot_dimension_numbers<[1], [0], [0], [1], [0, 0, 1, 1], [], []>} : vector<8x48xbf16>, vector<48x32xbf16>, vector<8x32xf32> -> vector<8x32xf32>
    %167 = arith.addf %141, %166 : vector<8x32xf32>
    %168 = tpu.concatenate %114, %167 in 0 : vector<8x32xf32>, vector<8x32xf32> -> vector<16x32xf32>
    %169 = arith.addf %0, %168 : vector<16x32xf32>
    %c0_84 = arith.constant 0 : index
    %c0_85 = arith.constant 0 : index
    %170 = vector.load %arg9[%c0_84, %c0_85] : memref<1x32xf32, #tpu.memory_space<vmem>>, vector<1x32xf32>
    %171 = vector.broadcast %170 : vector<1x32xf32> to vector<16x32xf32>
    %172 = arith.addf %169, %171 : vector<16x32xf32>
    %cst_86 = arith.constant dense<0.000000e+00> : vector<16xf32>
    %173 = vector.multi_reduction <add>, %172, %cst_86 [1] : vector<16x32xf32> to vector<16xf32>
    %174 = vector.shape_cast %173 : vector<16xf32> to vector<16x1xf32>
    %cst_87 = arith.constant 3.200000e+01 : f32
    %175 = vector.broadcast %cst_87 : f32 to vector<16x1xf32>
    %176 = arith.divf %174, %175 : vector<16x1xf32>
    %177 = vector.broadcast %176 : vector<16x1xf32> to vector<16x32xf32>
    %178 = arith.subf %172, %177 : vector<16x32xf32>
    %179 = arith.mulf %178, %178 : vector<16x32xf32>
    %cst_88 = arith.constant dense<0.000000e+00> : vector<16xf32>
    %180 = vector.multi_reduction <add>, %179, %cst_88 [1] : vector<16x32xf32> to vector<16xf32>
    %181 = vector.shape_cast %180 : vector<16xf32> to vector<16x1xf32>
    %cst_89 = arith.constant 3.200000e+01 : f32
    %182 = vector.broadcast %cst_89 : f32 to vector<16x1xf32>
    %183 = arith.divf %181, %182 : vector<16x1xf32>
    %184 = vector.broadcast %176 : vector<16x1xf32> to vector<16x32xf32>
    %185 = arith.subf %172, %184 : vector<16x32xf32>
    %cst_90 = arith.constant 9.99999997E-7 : f32
    %186 = vector.broadcast %cst_90 : f32 to vector<16x1xf32>
    %187 = arith.addf %183, %186 : vector<16x1xf32>
    %188 = math.rsqrt %187 : vector<16x1xf32>
    %189 = vector.broadcast %188 : vector<16x1xf32> to vector<16x32xf32>
    %190 = arith.mulf %185, %189 : vector<16x32xf32>
    %191 = arith.truncf %190 : vector<16x32xf32> to vector<16x32xbf16>
    %c0_91 = arith.constant 0 : index
    %c0_92 = arith.constant 0 : index
    %192 = vector.load %arg10[%c0_91, %c0_92] : memref<32x128xbf16, #tpu.memory_space<vmem>>, vector<32x128xbf16>
    %cst_93 = arith.constant dense<0.000000e+00> : vector<16x128xf32>
    %193 = tpu.matmul %191, %192, %cst_93 {dimension_numbers = #tpu.dot_dimension_numbers<[1], [0], [0], [1], [0, 0, 1, 1], [], []>} : vector<16x32xbf16>, vector<32x128xbf16>, vector<16x128xf32> -> vector<16x128xf32>
    %c0_94 = arith.constant 0 : index
    %c0_95 = arith.constant 0 : index
    %194 = vector.load %arg11[%c0_94, %c0_95] : memref<1x128xf32, #tpu.memory_space<vmem>>, vector<1x128xf32>
    %195 = vector.broadcast %194 : vector<1x128xf32> to vector<16x128xf32>
    %196 = arith.addf %193, %195 : vector<16x128xf32>
    %197 = arith.mulf %196, %196 : vector<16x128xf32>
    %198 = arith.mulf %196, %197 : vector<16x128xf32>
    %cst_96 = arith.constant 4.471500e-02 : f32
    %199 = vector.broadcast %cst_96 : f32 to vector<16x128xf32>
    %200 = arith.mulf %199, %198 : vector<16x128xf32>
    %201 = arith.addf %196, %200 : vector<16x128xf32>
    %cst_97 = arith.constant 0.797884583 : f32
    %202 = vector.broadcast %cst_97 : f32 to vector<16x128xf32>
    %203 = arith.mulf %202, %201 : vector<16x128xf32>
    %204 = math.tanh %203 : vector<16x128xf32>
    %cst_98 = arith.constant 1.000000e+00 : f32
    %205 = vector.broadcast %cst_98 : f32 to vector<16x128xf32>
    %206 = arith.addf %205, %204 : vector<16x128xf32>
    %cst_99 = arith.constant 5.000000e-01 : f32
    %207 = vector.broadcast %cst_99 : f32 to vector<16x128xf32>
    %208 = arith.mulf %207, %206 : vector<16x128xf32>
    %209 = arith.mulf %196, %208 : vector<16x128xf32>
    %210 = arith.truncf %209 : vector<16x128xf32> to vector<16x128xbf16>
    %c0_100 = arith.constant 0 : index
    %c0_101 = arith.constant 0 : index
    %211 = vector.load %arg12[%c0_100, %c0_101] : memref<128x32xbf16, #tpu.memory_space<vmem>>, vector<128x32xbf16>
    %cst_102 = arith.constant dense<0.000000e+00> : vector<16x32xf32>
    %212 = tpu.matmul %210, %211, %cst_102 {dimension_numbers = #tpu.dot_dimension_numbers<[1], [0], [0], [1], [0, 0, 1, 1], [], []>} : vector<16x128xbf16>, vector<128x32xbf16>, vector<16x32xf32> -> vector<16x32xf32>
    %c0_103 = arith.constant 0 : index
    %c0_104 = arith.constant 0 : index
    %213 = vector.load %arg13[%c0_103, %c0_104] : memref<1x32xf32, #tpu.memory_space<vmem>>, vector<1x32xf32>
    %214 = vector.broadcast %213 : vector<1x32xf32> to vector<16x32xf32>
    %215 = arith.addf %212, %214 : vector<16x32xf32>
    %216 = arith.addf %172, %215 : vector<16x32xf32>
    %c0_105 = arith.constant 0 : index
    %c0_106 = arith.constant 0 : index
    %217 = vector.load %arg14[%c0_105, %c0_106] : memref<16x32xf32, #tpu.memory_space<vmem>>, vector<16x32xf32>
    tpu.vector_store %arg14[%c0_105, %c0_106], %216 {strides = array<i32>} : memref<16x32xf32, #tpu.memory_space<vmem>>, vector<16x32xf32>,
    return
  }
  func.func @transform_0(%arg0: i32) -> (i32, i32) {
    %c0_i32 = arith.constant 0 : i32
    %c0_i32_0 = arith.constant 0 : i32
    return %arg0, %c0_i32 : i32, i32
  }
  func.func @transform_1(%arg0: i32) -> (i32, i32, i32) {
    %c0_i32 = arith.constant 0 : i32
    %c0_i32_0 = arith.constant 0 : i32
    %c0_i32_1 = arith.constant 0 : i32
    %c0_i32_2 = arith.constant 0 : i32
    return %c0_i32, %c0_i32_0, %c0_i32_1 : i32, i32, i32
  }
  func.func @transform_2(%arg0: i32) -> (i32, i32, i32) {
    %c0_i32 = arith.constant 0 : i32
    %c0_i32_0 = arith.constant 0 : i32
    %c0_i32_1 = arith.constant 0 : i32
    %c0_i32_2 = arith.constant 0 : i32
    return %c0_i32, %c0_i32_0, %c0_i32_1 : i32, i32, i32
  }
  func.func @transform_3(%arg0: i32) -> (i32, i32, i32) {
    %c0_i32 = arith.constant 0 : i32
    %c0_i32_0 = arith.constant 0 : i32
    %c0_i32_1 = arith.constant 0 : i32
    %c0_i32_2 = arith.constant 0 : i32
    return %c0_i32, %c0_i32_0, %c0_i32_1 : i32, i32, i32
  }
  func.func @transform_4(%arg0: i32) -> (i32, i32, i32) {
    %c0_i32 = arith.constant 0 : i32
    %c0_i32_0 = arith.constant 0 : i32
    %c0_i32_1 = arith.constant 0 : i32
    %c0_i32_2 = arith.constant 0 : i32
    return %c0_i32, %c0_i32_0, %c0_i32_1 : i32, i32, i32
  }
  func.func @transform_5(%arg0: i32) -> (i32, i32, i32) {
    %c0_i32 = arith.constant 0 : i32
    %c0_i32_0 = arith.constant 0 : i32
    %c0_i32_1 = arith.constant 0 : i32
    %c0_i32_2 = arith.constant 0 : i32
    return %c0_i32, %c0_i32_0, %c0_i32_1 : i32, i32, i32
  }
  func.func @transform_6(%arg0: i32) -> (i32, i32, i32) {
    %c0_i32 = arith.constant 0 : i32
    %c0_i32_0 = arith.constant 0 : i32
    %c0_i32_1 = arith.constant 0 : i32
    %c0_i32_2 = arith.constant 0 : i32
    return %c0_i32, %c0_i32_0, %c0_i32_1 : i32, i32, i32
  }
  func.func @transform_7(%arg0: i32) -> (i32, i32, i32) {
    %c0_i32 = arith.constant 0 : i32
    %c0_i32_0 = arith.constant 0 : i32
    %c0_i32_1 = arith.constant 0 : i32
    %c0_i32_2 = arith.constant 0 : i32
    return %c0_i32, %c0_i32_0, %c0_i32_1 : i32, i32, i32
  }
  func.func @transform_8(%arg0: i32) -> (i32, i32) {
    %c0_i32 = arith.constant 0 : i32
    %c0_i32_0 = arith.constant 0 : i32
    %c0_i32_1 = arith.constant 0 : i32
    return %c0_i32, %c0_i32_0 : i32, i32
  }
  func.func @transform_9(%arg0: i32) -> (i32, i32) {
    %c0_i32 = arith.constant 0 : i32
    %c0_i32_0 = arith.constant 0 : i32
    %c0_i32_1 = arith.constant 0 : i32
    return %c0_i32, %c0_i32_0 : i32, i32
  }
  func.func @transform_10(%arg0: i32) -> (i32, i32) {
    %c0_i32 = arith.constant 0 : i32
    %c0_i32_0 = arith.constant 0 : i32
    %c0_i32_1 = arith.constant 0 : i32
    return %c0_i32, %c0_i32_0 : i32, i32
  }
  func.func @transform_11(%arg0: i32) -> (i32, i32) {
    %c0_i32 = arith.constant 0 : i32
    %c0_i32_0 = arith.constant 0 : i32
    %c0_i32_1 = arith.constant 0 : i32
    return %c0_i32, %c0_i32_0 : i32, i32
  }
  func.func @transform_12(%arg0: i32) -> (i32, i32) {
    %c0_i32 = arith.constant 0 : i32
    %c0_i32_0 = arith.constant 0 : i32
    %c0_i32_1 = arith.constant 0 : i32
    return %c0_i32, %c0_i32_0 : i32, i32
  }
  func.func @transform_13(%arg0: i32) -> (i32, i32) {
    %c0_i32 = arith.constant 0 : i32
    %c0_i32_0 = arith.constant 0 : i32
    return %arg0, %c0_i32 : i32, i32
  }
}

</mosaic_0001>

<llo_original>
// kernel: tpu_custom_call.1
$region0: #{tpu_custom_call.1}
  #allocation0 [shape = 'u32[]', space=smem, size = 0x4, offset = 0x4, fixed_abs, tag = 'smem constant byte address 0x4 - core index']
  #allocation1 [shape = 'u32[144,128]{1,0:T(1,128)}', space=vmem, size = 0x12000, scoped, tag = 'internal scratch']
  %s0 = inlined_call_operand.vmem [shape: f32[16,32], index: 0, kind: input, shape index: {}]
  %s1 = inlined_call_operand.vmem [shape: bf16[2,32,48], index: 1, kind: input, shape index: {}]
  %s2 = inlined_call_operand.vmem [shape: f32[2,1,48], index: 2, kind: input, shape index: {}]
  %s3 = inlined_call_operand.vmem [shape: bf16[2,32,48], index: 3, kind: input, shape index: {}]
  %s4 = inlined_call_operand.vmem [shape: f32[2,1,48], index: 4, kind: input, shape index: {}]
  %s5 = inlined_call_operand.vmem [shape: bf16[2,32,48], index: 5, kind: input, shape index: {}]
  %s6 = inlined_call_operand.vmem [shape: f32[2,1,48], index: 6, kind: input, shape index: {}]
  %s7 = inlined_call_operand.vmem [shape: bf16[2,48,32], index: 7, kind: input, shape index: {}]
  %s8 = inlined_call_operand.vmem [shape: f32[1,32], index: 8, kind: input, shape index: {}]
  %s9 = inlined_call_operand.vmem [shape: bf16[32,128], index: 9, kind: input, shape index: {}]
  %s10 = inlined_call_operand.vmem [shape: f32[1,128], index: 10, kind: input, shape index: {}]
  %s11 = inlined_call_operand.vmem [shape: bf16[128,32], index: 11, kind: input, shape index: {}]
  %s12 = inlined_call_operand.vmem [shape: f32[1,32], index: 12, kind: input, shape index: {}]
  %s13 = inlined_call_operand.hbm [shape: f32[16,32], index: 13, kind: output, shape index: {}]
  %s14 = sld [smem:[#allocation0]]
  $region62: #{tpu_custom_call.1} parent=0
    _
  %s16 = ssub.s32 1, %s14
  %s17 = scalar_select 0, %s16, %s14
  $region1: #{tpu_custom_call.1} parent=0
    #allocation2 [shape = 'u8[8192]{0}', space=vmem, size = 0x2000, scoped, tag = 'output window, operand 0, single buffered']
    #allocation3 [shape = 's32[1]{0}', space=sflag, size = 0x4, scoped, tag = 'scoped memory for tpu_custom_call.1']
    %18 = vsyncpa [#allocation3], 0
    // Predicated region
    $region2: #{tpu_custom_call.1} parent=1 // pred_check
      _
    $region3: #{tpu_custom_call.1} parent=1 // pred_check_branch
      %20 = sbr.rel (0) target = $region5
    $region4: #{tpu_custom_call.1} parent=1 // pred_region
      _
    $region5: #{tpu_custom_call.1} parent=1 // pred_fallthru
      _
    // Predicated region
    $region6: #{tpu_custom_call.1} parent=1 // pred_check
      _
    $region7: #{tpu_custom_call.1} parent=1 // pred_check_branch
      %22 = sbr.rel (0) target = $region9
    $region8: #{tpu_custom_call.1} parent=1 // pred_region
      _
    $region9: #{tpu_custom_call.1} parent=1 // pred_fallthru
      _
    // Predicated region
    $region10: #{tpu_custom_call.1} parent=1 // pred_check
      _
    $region11: #{tpu_custom_call.1} parent=1 // pred_check_branch
      %24 = sbr.rel (0) target = $region13
    $region12: #{tpu_custom_call.1} parent=1 // pred_region
      _
    $region13: #{tpu_custom_call.1} parent=1 // pred_fallthru
      _
    // Predicated region
    $region14: #{tpu_custom_call.1} parent=1 // pred_check
      _
    $region15: #{tpu_custom_call.1} parent=1 // pred_check_branch
      %26 = sbr.rel (0) target = $region17
    $region16: #{tpu_custom_call.1} parent=1 // pred_region
      _
    $region17: #{tpu_custom_call.1} parent=1 // pred_fallthru
      _
    // Predicated region
    $region18: #{tpu_custom_call.1} parent=1 // pred_check
      _
    $region19: #{tpu_custom_call.1} parent=1 // pred_check_branch
      %28 = sbr.rel (0) target = $region21
    $region20: #{tpu_custom_call.1} parent=1 // pred_region
      _
    $region21: #{tpu_custom_call.1} parent=1 // pred_fallthru
      _
    // Predicated region
    $region22: #{tpu_custom_call.1} parent=1 // pred_check
      _
    $region23: #{tpu_custom_call.1} parent=1 // pred_check_branch
      %30 = sbr.rel (0) target = $region25
    $region24: #{tpu_custom_call.1} parent=1 // pred_region
      _
    $region25: #{tpu_custom_call.1} parent=1 // pred_fallthru
      _
    // Predicated region
    $region26: #{tpu_custom_call.1} parent=1 // pred_check
      _
    $region27: #{tpu_custom_call.1} parent=1 // pred_check_branch
      %32 = sbr.rel (0) target = $region29
    $region28: #{tpu_custom_call.1} parent=1 // pred_region
      _
    $region29: #{tpu_custom_call.1} parent=1 // pred_fallthru
      _
    // Predicated region
    $region30: #{tpu_custom_call.1} parent=1 // pred_check
      _
    $region31: #{tpu_custom_call.1} parent=1 // pred_check_branch
      %34 = sbr.rel (0) target = $region33
    $region32: #{tpu_custom_call.1} parent=1 // pred_region
      _
    $region33: #{tpu_custom_call.1} parent=1 // pred_fallthru
      _
    // Predicated region
    $region34: #{tpu_custom_call.1} parent=1 // pred_check
      _
    $region35: #{tpu_custom_call.1} parent=1 // pred_check_branch
      %36 = sbr.rel (0) target = $region37
    $region36: #{tpu_custom_call.1} parent=1 // pred_region
      _
    $region37: #{tpu_custom_call.1} parent=1 // pred_fallthru
      _
    // Predicated region
    $region38: #{tpu_custom_call.1} parent=1 // pred_check
      _
    $region39: #{tpu_custom_call.1} parent=1 // pred_check_branch
      %38 = sbr.rel (0) target = $region41
    $region40: #{tpu_custom_call.1} parent=1 // pred_region
      _
    $region41: #{tpu_custom_call.1} parent=1 // pred_fallthru
      _
    // Predicated region
    $region42: #{tpu_custom_call.1} parent=1 // pred_check
      _
    $region43: #{tpu_custom_call.1} parent=1 // pred_check_branch
      %40 = sbr.rel (0) target = $region45
    $region44: #{tpu_custom_call.1} parent=1 // pred_region
      _
    $region45: #{tpu_custom_call.1} parent=1 // pred_fallthru
      _
    // Predicated region
    $region46: #{tpu_custom_call.1} parent=1 // pred_check
      _
    $region47: #{tpu_custom_call.1} parent=1 // pred_check_branch
      %42 = sbr.rel (0) target = $region49
    $region48: #{tpu_custom_call.1} parent=1 // pred_region
      _
    $region49: #{tpu_custom_call.1} parent=1 // pred_fallthru
      _
    // Predicated region
    $region50: #{tpu_custom_call.1} parent=1 // pred_check
      _
    $region51: #{tpu_custom_call.1} parent=1 // pred_check_branch
      %44 = sbr.rel (0) target = $region53
    $region52: #{tpu_custom_call.1} parent=1 // pred_region
      _
    $region53: #{tpu_custom_call.1} parent=1 // pred_fallthru
      _
    %v46 = vld [vmem:[%s0] sm:$0xff]
    %v47 = vld [vmem:[%s0 + $0x8] sm:$0xff]
    %vm48 = vcmask 261120
    %v49 = vsel %vm48, %v46, 0.0
    %50 = vadd.xlane.f32.xlu0 %v49
    %v51 = vpop.xlane.xlu0 %50
    %v52 = vsel %vm48, %v47, 0.0
    %53 = vadd.xlane.f32.xlu0 %v52
    %v54 = vpop.xlane.xlu0 %53
    %v55 = vrcp.pop 32.0
    %v56 = vmul.f32 %v51, %v55
    %v57 = vmul.f32 %v54, %v55
    %v58 = vsub.f32 %v46, %v56
    %v59 = vsub.f32 %v47, %v57
    %v60 = vmul.f32 %v58, %v58
    %v61 = vmul.f32 %v59, %v59
    %v62 = vsel %vm48, %v60, 0.0
    %63 = vadd.xlane.f32.xlu0 %v62
    %v64 = vpop.xlane.xlu0 %63
    %v65 = vsel %vm48, %v61, 0.0
    %66 = vadd.xlane.f32.xlu0 %v65
    %v67 = vpop.xlane.xlu0 %66
    %v68 = vmul.f32 %v64, %v55
    %v69 = vmul.f32 %v67, %v55
    %v70 = vadd.f32 %v68, 1e-06
    %v71 = vadd.f32 %v69, 1e-06
    %v72 = vrsqrt.pop %v70
    %v73 = vrsqrt.pop %v71
    %v74 = vmul.f32 %v58, %v72
    %v75 = vmul.f32 %v59, %v73
    %v76 = vpack.c.bf16 %v75, %v74
    %v77 = vld [vmem:[%s1] sm:$0xf]
    %v78 = vld [vmem:[%s1 + $0x4] sm:$0xf]
    %v79 = vld [vmem:[%s1 + $0x8] sm:$0xf]
    %v80 = vld [vmem:[%s1 + $0xc] sm:$0xf]
    %v81 = vld [vmem:[%s2] sm:$0x1]
    %v83 = vlaneseq
    %v84 = vshrl.u32 %v83, 7
    %v85 = vsub.s32 0, %v84
    %v86 = vrot.slane %v81, %v85
    %v92 = vunpack.c.l.b16 %v77
    %v93 = vunpack.c.l.b16 %v78
    %v94 = vunpack.c.l.b16 %v79
    %v95 = vunpack.c.l.b16 %v80
    %v96 = vpack.c.b16 %v93, %v92
    %v97 = vpack.c.b16 %v95, %v94
    %v101 = vsel %vm48, %v76, 0
    %103 = vmatprep.subr.bf16.mxu0 0
    %104 = vmatpush1.bf16.msra.mxu0 %v96
    %105 = vmatprep.subr.bf16.mxu0 0
    %106 = vmatpush1.bf16.msra.mxu0 %v97
    %107 = vmatprep.subr.bf16.mxu0 0
    %108 = vmatpush1.bf16.msra.mxu0 0
    %109 = vmatprep.subr.bf16.mxu0 0
    %110 = vmatpush1.bf16.msra.mxu0 0
    %111 = vmatprep.subr.bf16.mxu0 0
    %112 = vmatpush1.bf16.msra.mxu0 0
    %113 = vmatprep.subr.bf16.mxu0 0
    %114 = vmatpush1.bf16.msra.mxu0 0
    %115 = vmatprep.subr.bf16.mxu0 0
    %116 = vmatpush1.bf16.msra.mxu0 0
    %117 = vmatprep.subr.bf16.mxu0 0
    %118 = vmatpush1.bf16.msra.mxu0 0
    %119 = vmatprep.subr.bf16.mxu0 0
    %120 = vmatpush1.bf16.msra.mxu0 0
    %121 = vmatprep.subr.bf16.mxu0 0
    %122 = vmatpush1.bf16.msra.mxu0 0
    %123 = vmatprep.subr.bf16.mxu0 0
    %124 = vmatpush1.bf16.msra.mxu0 0
    %125 = vmatprep.subr.bf16.mxu0 0
    %126 = vmatpush1.bf16.msra.mxu0 0
    %127 = vmatprep.subr.bf16.mxu0 0
    %128 = vmatpush1.bf16.msra.mxu0 0
    %129 = vmatprep.subr.bf16.mxu0 0
    %130 = vmatpush1.bf16.msra.mxu0 0
    %131 = vmatprep.subr.bf16.mxu0 0
    %132 = vmatpush1.bf16.msra.mxu0 0
    %133 = vmatprep.subr.bf16.mxu0 0
    %134 = vmatpush1.bf16.msra.mxu0 0
    %135 = vmatprep.mubr.bf16.mxu0 0
    %136 = vmatmul.mubr.bf16.gmra.mrb[0].mxu0 %v101
    %v137 = vpop.f32.mrb[0].mxu0
    %v138 = vadd.f32 %v86, %v137
    %v139 = vpop.f32.mrb[0].mxu0
    %v140 = vpop.f32.mrb[0].mxu0
    %v141 = vadd.f32 %v86, %v140
    %v142 = vpop.f32.mrb[0].mxu0
    %143 = vdwg.mxu0
    %v144 = vld [vmem:[%s3] sm:$0xf]
    %v145 = vld [vmem:[%s3 + $0x4] sm:$0xf]
    %v146 = vld [vmem:[%s3 + $0x8] sm:$0xf]
    %v147 = vld [vmem:[%s3 + $0xc] sm:$0xf]
    %v148 = vld [vmem:[%s4] sm:$0x1]
    %v150 = vlaneseq
    %v151 = vshrl.u32 %v150, 7
    %v152 = vsub.s32 0, %v151
    %v153 = vrot.slane %v148, %v152
    %v159 = vunpack.c.l.b16 %v144
    %v160 = vunpack.c.l.b16 %v145
    %v161 = vunpack.c.l.b16 %v146
    %v162 = vunpack.c.l.b16 %v147
    %v163 = vpack.c.b16 %v160, %v159
    %v164 = vpack.c.b16 %v162, %v161
    %167 = vmatprep.subr.bf16.mxu0 0
    %168 = vmatpush1.bf16.msra.mxu0 %v163
    %169 = vmatprep.subr.bf16.mxu0 0
    %170 = vmatpush1.bf16.msra.mxu0 %v164
    %171 = vmatprep.subr.bf16.mxu0 0
    %172 = vmatpush1.bf16.msra.mxu0 0
    %173 = vmatprep.subr.bf16.mxu0 0
    %174 = vmatpush1.bf16.msra.mxu0 0
    %175 = vmatprep.subr.bf16.mxu0 0
    %176 = vmatpush1.bf16.msra.mxu0 0
    %177 = vmatprep.subr.bf16.mxu0 0
    %178 = vmatpush1.bf16.msra.mxu0 0
    %179 = vmatprep.subr.bf16.mxu0 0
    %180 = vmatpush1.bf16.msra.mxu0 0
    %181 = vmatprep.subr.bf16.mxu0 0
    %182 = vmatpush1.bf16.msra.mxu0 0
    %183 = vmatprep.subr.bf16.mxu0 0
    %184 = vmatpush1.bf16.msra.mxu0 0
    %185 = vmatprep.subr.bf16.mxu0 0
    %186 = vmatpush1.bf16.msra.mxu0 0
    %187 = vmatprep.subr.bf16.mxu0 0
    %188 = vmatpush1.bf16.msra.mxu0 0
    %189 = vmatprep.subr.bf16.mxu0 0
    %190 = vmatpush1.bf16.msra.mxu0 0
    %191 = vmatprep.subr.bf16.mxu0 0
    %192 = vmatpush1.bf16.msra.mxu0 0
    %193 = vmatprep.subr.bf16.mxu0 0
    %194 = vmatpush1.bf16.msra.mxu0 0
    %195 = vmatprep.subr.bf16.mxu0 0
    %196 = vmatpush1.bf16.msra.mxu0 0
    %197 = vmatprep.subr.bf16.mxu0 0
    %198 = vmatpush1.bf16.msra.mxu0 0
    %199 = vmatprep.mubr.bf16.mxu0 0
    %200 = vmatmul.mubr.bf16.gmra.mrb[0].mxu0 %v101
    %v201 = vpop.f32.mrb[0].mxu0
    %v202 = vadd.f32 %v153, %v201
    %v203 = vpop.f32.mrb[0].mxu0
    %v204 = vpop.f32.mrb[0].mxu0
    %v205 = vadd.f32 %v153, %v204
    %v206 = vpop.f32.mrb[0].mxu0
    %207 = vdwg.mxu0
    %v208 = vld [vmem:[%s5] sm:$0xf]
    %v209 = vld [vmem:[%s5 + $0x4] sm:$0xf]
    %v210 = vld [vmem:[%s5 + $0x8] sm:$0xf]
    %v211 = vld [vmem:[%s5 + $0xc] sm:$0xf]
    %v212 = vld [vmem:[%s6] sm:$0x1]
    %v214 = vlaneseq
    %v215 = vshrl.u32 %v214, 7
    %v216 = vsub.s32 0, %v215
    %v217 = vrot.slane %v212, %v216
    %v223 = vunpack.c.l.b16 %v208
    %v224 = vunpack.c.l.b16 %v209
    %v225 = vunpack.c.l.b16 %v210
    %v226 = vunpack.c.l.b16 %v211
    %v227 = vpack.c.b16 %v224, %v223
    %v228 = vpack.c.b16 %v226, %v225
    %231 = vmatprep.subr.bf16.mxu0 0
    %232 = vmatpush1.bf16.msra.mxu0 %v227
    %233 = vmatprep.subr.bf16.mxu0 0
    %234 = vmatpush1.bf16.msra.mxu0 %v228
    %235 = vmatprep.subr.bf16.mxu0 0
    %236 = vmatpush1.bf16.msra.mxu0 0
    %237 = vmatprep.subr.bf16.mxu0 0
    %238 = vmatpush1.bf16.msra.mxu0 0
    %239 = vmatprep.subr.bf16.mxu0 0
    %240 = vmatpush1.bf16.msra.mxu0 0
    %241 = vmatprep.subr.bf16.mxu0 0
    %242 = vmatpush1.bf16.msra.mxu0 0
    %243 = vmatprep.subr.bf16.mxu0 0
    %244 = vmatpush1.bf16.msra.mxu0 0
    %245 = vmatprep.subr.bf16.mxu0 0
    %246 = vmatpush1.bf16.msra.mxu0 0
    %247 = vmatprep.subr.bf16.mxu0 0
    %248 = vmatpush1.bf16.msra.mxu0 0
    %249 = vmatprep.subr.bf16.mxu0 0
    %250 = vmatpush1.bf16.msra.mxu0 0
    %251 = vmatprep.subr.bf16.mxu0 0
    %252 = vmatpush1.bf16.msra.mxu0 0
    %253 = vmatprep.subr.bf16.mxu0 0
    %254 = vmatpush1.bf16.msra.mxu0 0
    %255 = vmatprep.subr.bf16.mxu0 0
    %256 = vmatpush1.bf16.msra.mxu0 0
    %257 = vmatprep.subr.bf16.mxu0 0
    %258 = vmatpush1.bf16.msra.mxu0 0
    %259 = vmatprep.subr.bf16.mxu0 0
    %260 = vmatpush1.bf16.msra.mxu0 0
    %261 = vmatprep.subr.bf16.mxu0 0
    %262 = vmatpush1.bf16.msra.mxu0 0
    %263 = vmatprep.mubr.bf16.mxu0 0
    %264 = vmatmul.mubr.bf16.gmra.mrb[0].mxu0 %v101
    %v265 = vpop.f32.mrb[0].mxu0
    %v266 = vadd.f32 %v217, %v265
    %v267 = vpop.f32.mrb[0].mxu0
    %v268 = vpop.f32.mrb[0].mxu0
    %v269 = vadd.f32 %v217, %v268
    %v270 = vpop.f32.mrb[0].mxu0
    %271 = vdwg.mxu0
    %s272 = scalar_lea.vmem %s1, 16
    %v273 = vld [vmem:[%s272] sm:$0xf]
    %v274 = vld [vmem:[%s272 + $0x4] sm:$0xf]
    %v275 = vld [vmem:[%s272 + $0x8] sm:$0xf]
    %v276 = vld [vmem:[%s272 + $0xc] sm:$0xf]
    %s277 = scalar_lea.vmem %s2, 1
    %v278 = vld [vmem:[%s277] sm:$0x1]
    %v280 = vlaneseq
    %v281 = vshrl.u32 %v280, 7
    %v282 = vsub.s32 0, %v281
    %v283 = vrot.slane %v278, %v282
    %v289 = vunpack.c.l.b16 %v273
    %v290 = vunpack.c.l.b16 %v274
    %v291 = vunpack.c.l.b16 %v275
    %v292 = vunpack.c.l.b16 %v276
    %v293 = vpack.c.b16 %v290, %v289
    %v294 = vpack.c.b16 %v292, %v291
    %297 = vmatprep.subr.bf16.mxu0 0
    %298 = vmatpush1.bf16.msra.mxu0 %v293
    %299 = vmatprep.subr.bf16.mxu0 0
    %300 = vmatpush1.bf16.msra.mxu0 %v294
    %301 = vmatprep.subr.bf16.mxu0 0
    %302 = vmatpush1.bf16.msra.mxu0 0
    %303 = vmatprep.subr.bf16.mxu0 0
    %304 = vmatpush1.bf16.msra.mxu0 0
    %305 = vmatprep.subr.bf16.mxu0 0
    %306 = vmatpush1.bf16.msra.mxu0 0
    %307 = vmatprep.subr.bf16.mxu0 0
    %308 = vmatpush1.bf16.msra.mxu0 0
    %309 = vmatprep.subr.bf16.mxu0 0
    %310 = vmatpush1.bf16.msra.mxu0 0
    %311 = vmatprep.subr.bf16.mxu0 0
    %312 = vmatpush1.bf16.msra.mxu0 0
    %313 = vmatprep.subr.bf16.mxu0 0
    %314 = vmatpush1.bf16.msra.mxu0 0
    %315 = vmatprep.subr.bf16.mxu0 0
    %316 = vmatpush1.bf16.msra.mxu0 0
    %317 = vmatprep.subr.bf16.mxu0 0
    %318 = vmatpush1.bf16.msra.mxu0 0
    %319 = vmatprep.subr.bf16.mxu0 0
    %320 = vmatpush1.bf16.msra.mxu0 0
    %321 = vmatprep.subr.bf16.mxu0 0
    %322 = vmatpush1.bf16.msra.mxu0 0
    %323 = vmatprep.subr.bf16.mxu0 0
    %324 = vmatpush1.bf16.msra.mxu0 0
    %325 = vmatprep.subr.bf16.mxu0 0
    %326 = vmatpush1.bf16.msra.mxu0 0
    %327 = vmatprep.subr.bf16.mxu0 0
    %328 = vmatpush1.bf16.msra.mxu0 0
    %329 = vmatprep.mubr.bf16.mxu0 0
    %330 = vmatmul.mubr.bf16.gmra.mrb[0].mxu0 %v101
    %v331 = vpop.f32.mrb[0].mxu0
    %v332 = vadd.f32 %v283, %v331
    %v333 = vpop.f32.mrb[0].mxu0
    %v334 = vpop.f32.mrb[0].mxu0
    %v335 = vadd.f32 %v283, %v334
    %v336 = vpop.f32.mrb[0].mxu0
    %337 = vdwg.mxu0
    %s338 = scalar_lea.vmem %s3, 16
    %v339 = vld [vmem:[%s338] sm:$0xf]
    %v340 = vld [vmem:[%s338 + $0x4] sm:$0xf]
    %v341 = vld [vmem:[%s338 + $0x8] sm:$0xf]
    %v342 = vld [vmem:[%s338 + $0xc] sm:$0xf]
    %s343 = scalar_lea.vmem %s4, 1
    %v344 = vld [vmem:[%s343] sm:$0x1]
    %v346 = vlaneseq
    %v347 = vshrl.u32 %v346, 7
    %v348 = vsub.s32 0, %v347
    %v349 = vrot.slane %v344, %v348
    %v355 = vunpack.c.l.b16 %v339
    %v356 = vunpack.c.l.b16 %v340
    %v357 = vunpack.c.l.b16 %v341
    %v358 = vunpack.c.l.b16 %v342
    %v359 = vpack.c.b16 %v356, %v355
    %v360 = vpack.c.b16 %v358, %v357
    %363 = vmatprep.subr.bf16.mxu0 0
    %364 = vmatpush1.bf16.msra.mxu0 %v359
    %365 = vmatprep.subr.bf16.mxu0 0
    %366 = vmatpush1.bf16.msra.mxu0 %v360
    %367 = vmatprep.subr.bf16.mxu0 0
    %368 = vmatpush1.bf16.msra.mxu0 0
    %369 = vmatprep.subr.bf16.mxu0 0
    %370 = vmatpush1.bf16.msra.mxu0 0
    %371 = vmatprep.subr.bf16.mxu0 0
    %372 = vmatpush1.bf16.msra.mxu0 0
    %373 = vmatprep.subr.bf16.mxu0 0
    %374 = vmatpush1.bf16.msra.mxu0 0
    %375 = vmatprep.subr.bf16.mxu0 0
    %376 = vmatpush1.bf16.msra.mxu0 0
    %377 = vmatprep.subr.bf16.mxu0 0
    %378 = vmatpush1.bf16.msra.mxu0 0
    %379 = vmatprep.subr.bf16.mxu0 0
    %380 = vmatpush1.bf16.msra.mxu0 0
    %381 = vmatprep.subr.bf16.mxu0 0
    %382 = vmatpush1.bf16.msra.mxu0 0
    %383 = vmatprep.subr.bf16.mxu0 0
    %384 = vmatpush1.bf16.msra.mxu0 0
    %385 = vmatprep.subr.bf16.mxu0 0
    %386 = vmatpush1.bf16.msra.mxu0 0
    %387 = vmatprep.subr.bf16.mxu0 0
    %388 = vmatpush1.bf16.msra.mxu0 0
    %389 = vmatprep.subr.bf16.mxu0 0
    %390 = vmatpush1.bf16.msra.mxu0 0
    %391 = vmatprep.subr.bf16.mxu0 0
    %392 = vmatpush1.bf16.msra.mxu0 0
    %393 = vmatprep.subr.bf16.mxu0 0
    %394 = vmatpush1.bf16.msra.mxu0 0
    %395 = vmatprep.mubr.bf16.mxu0 0
    %396 = vmatmul.mubr.bf16.gmra.mrb[0].mxu0 %v101
    %v397 = vpop.f32.mrb[0].mxu0
    %v398 = vadd.f32 %v349, %v397
    %v399 = vpop.f32.mrb[0].mxu0
    %v400 = vpop.f32.mrb[0].mxu0
    %v401 = vadd.f32 %v349, %v400
    %v402 = vpop.f32.mrb[0].mxu0
    %403 = vdwg.mxu0
    %s404 = scalar_lea.vmem %s5, 16
    %v405 = vld [vmem:[%s404] sm:$0xf]
    %v406 = vld [vmem:[%s404 + $0x4] sm:$0xf]
    %v407 = vld [vmem:[%s404 + $0x8] sm:$0xf]
    %v408 = vld [vmem:[%s404 + $0xc] sm:$0xf]
    %s409 = scalar_lea.vmem %s6, 1
    %v410 = vld [vmem:[%s409] sm:$0x1]
    %v412 = vlaneseq
    %v413 = vshrl.u32 %v412, 7
    %v414 = vsub.s32 0, %v413
    %v415 = vrot.slane %v410, %v414
    %v421 = vunpack.c.l.b16 %v405
    %v422 = vunpack.c.l.b16 %v406
    %v423 = vunpack.c.l.b16 %v407
    %v424 = vunpack.c.l.b16 %v408
    %v425 = vpack.c.b16 %v422, %v421
    %v426 = vpack.c.b16 %v424, %v423
    %429 = vmatprep.subr.bf16.mxu0 0
    %430 = vmatpush1.bf16.msra.mxu0 %v425
    %431 = vmatprep.subr.bf16.mxu0 0
    %432 = vmatpush1.bf16.msra.mxu0 %v426
    %433 = vmatprep.subr.bf16.mxu0 0
    %434 = vmatpush1.bf16.msra.mxu0 0
    %435 = vmatprep.subr.bf16.mxu0 0
    %436 = vmatpush1.bf16.msra.mxu0 0
    %437 = vmatprep.subr.bf16.mxu0 0
    %438 = vmatpush1.bf16.msra.mxu0 0
    %439 = vmatprep.subr.bf16.mxu0 0
    %440 = vmatpush1.bf16.msra.mxu0 0
    %441 = vmatprep.subr.bf16.mxu0 0
    %442 = vmatpush1.bf16.msra.mxu0 0
    %443 = vmatprep.subr.bf16.mxu0 0
    %444 = vmatpush1.bf16.msra.mxu0 0
    %445 = vmatprep.subr.bf16.mxu0 0
    %446 = vmatpush1.bf16.msra.mxu0 0
    %447 = vmatprep.subr.bf16.mxu0 0
    %448 = vmatpush1.bf16.msra.mxu0 0
    %449 = vmatprep.subr.bf16.mxu0 0
    %450 = vmatpush1.bf16.msra.mxu0 0
    %451 = vmatprep.subr.bf16.mxu0 0
    %452 = vmatpush1.bf16.msra.mxu0 0
    %453 = vmatprep.subr.bf16.mxu0 0
    %454 = vmatpush1.bf16.msra.mxu0 0
    %455 = vmatprep.subr.bf16.mxu0 0
    %456 = vmatpush1.bf16.msra.mxu0 0
    %457 = vmatprep.subr.bf16.mxu0 0
    %458 = vmatpush1.bf16.msra.mxu0 0
    %459 = vmatprep.subr.bf16.mxu0 0
    %460 = vmatpush1.bf16.msra.mxu0 0
    %461 = vmatprep.mubr.bf16.mxu0 0
    %462 = vmatmul.mubr.bf16.gmra.mrb[0].mxu0 %v101
    %v463 = vpop.f32.mrb[0].mxu0
    %v464 = vadd.f32 %v415, %v463
    %v465 = vpop.f32.mrb[0].mxu0
    %v466 = vpop.f32.mrb[0].mxu0
    %v467 = vadd.f32 %v415, %v466
    %v468 = vpop.f32.mrb[0].mxu0
    %469 = vdwg.mxu0
    %v470 = vpack.c.bf16 %v138, %v138
    %v471 = vpack.c.bf16 %v202, %v202
    %v472 = vpack.c.bf16 %v266, %v266
    %vm473 = vcmask 392192
    %v475 = vsel %vm473, %v470, 0
    %v478 = vsel %vm473, %v471, 0
    %480 = vmatprep.subr.bf16.mxu0 0
    %481 = vmatpush1.bf16.xpose.msra.mxu0 %v478
    %482 = vmatprep.subr.bf16.mxu0 0
    %483 = vmatpush1.bf16.xpose.msra.mxu0 0
    %484 = vmatprep.subr.bf16.mxu0 0
    %485 = vmatpush1.bf16.xpose.msra.mxu0 0
    %486 = vmatprep.subr.bf16.mxu0 0
    %487 = vmatpush1.bf16.xpose.msra.mxu0 0
    %488 = vmatprep.subr.bf16.mxu0 0
    %489 = vmatpush1.bf16.xpose.msra.mxu0 0
    %490 = vmatprep.subr.bf16.mxu0 0
    %491 = vmatpush1.bf16.xpose.msra.mxu0 0
    %492 = vmatprep.subr.bf16.mxu0 0
    %493 = vmatpush1.bf16.xpose.msra.mxu0 0
    %494 = vmatprep.subr.bf16.mxu0 0
    %495 = vmatpush1.bf16.xpose.msra.mxu0 0
    %496 = vmatprep.subr.bf16.mxu0 0
    %497 = vmatpush1.bf16.xpose.msra.mxu0 0
    %498 = vmatprep.subr.bf16.mxu0 0
    %499 = vmatpush1.bf16.xpose.msra.mxu0 0
    %500 = vmatprep.subr.bf16.mxu0 0
    %501 = vmatpush1.bf16.xpose.msra.mxu0 0
    %502 = vmatprep.subr.bf16.mxu0 0
    %503 = vmatpush1.bf16.xpose.msra.mxu0 0
    %504 = vmatprep.subr.bf16.mxu0 0
    %505 = vmatpush1.bf16.xpose.msra.mxu0 0
    %506 = vmatprep.subr.bf16.mxu0 0
    %507 = vmatpush1.bf16.xpose.msra.mxu0 0
    %508 = vmatprep.subr.bf16.mxu0 0
    %509 = vmatpush1.bf16.xpose.msra.mxu0 0
    %510 = vmatprep.subr.bf16.mxu0 0
    %511 = vmatpush1.bf16.xpose.msra.mxu0 0
    %512 = vmatprep.mubr.bf16.mxu0 0
    %513 = vmatmul.mubr.bf16.gmra.mrb[0].mxu0 %v475
    %v514 = vpop.f32.mrb[0].mxu0
    %v515 = vadd.f32 0.0, %v514
    %v516 = vpop.f32.mrb[0].mxu0
    %v517 = vpop.f32.mrb[0].mxu0
    %v518 = vpop.f32.mrb[0].mxu0
    %519 = vdwg.mxu0
    %v520 = vmul.f32 %v515, 0.14433756
    %vm521 = vcmask 64512
    %v522 = vsel %vm521, %v520, -inf
    %523 = vmax.xlane.f32.xlu0 %v522
    %v524 = vpop.xlane.xlu0 %523
    %v525 = vsub.f32 %v520, %v524
    %v526 = vmul.f32 %v525, 1.442695
    %v527 = vpow.pop %v526
    %v528 = vsel %vm521, %v527, 0.0
    %529 = vadd.xlane.f32.xlu0 %v528
    %v530 = vpop.xlane.xlu0 %529
    %v531 = vrcp.pop %v530
    %v532 = vmul.f32 %v527, %v531
    %v533 = vpack.c.bf16 %v532, %v532
    %v535 = vsel %vm521, %v533, 0
    %vm537 = vcmask 1043456
    %v539 = vsel %vm537, %v472, 0
    %541 = vmatprep.subr.bf16.mxu0 0
    %542 = vmatpush1.bf16.msra.mxu0 %v539
    %543 = vmatprep.subr.bf16.mxu0 0
    %544 = vmatpush1.bf16.msra.mxu0 0
    %545 = vmatprep.subr.bf16.mxu0 0
    %546 = vmatpush1.bf16.msra.mxu0 0
    %547 = vmatprep.subr.bf16.mxu0 0
    %548 = vmatpush1.bf16.msra.mxu0 0
    %549 = vmatprep.subr.bf16.mxu0 0
    %550 = vmatpush1.bf16.msra.mxu0 0
    %551 = vmatprep.subr.bf16.mxu0 0
    %552 = vmatpush1.bf16.msra.mxu0 0
    %553 = vmatprep.subr.bf16.mxu0 0
    %554 = vmatpush1.bf16.msra.mxu0 0
    %555 = vmatprep.subr.bf16.mxu0 0
    %556 = vmatpush1.bf16.msra.mxu0 0
    %557 = vmatprep.subr.bf16.mxu0 0
    %558 = vmatpush1.bf16.msra.mxu0 0
    %559 = vmatprep.subr.bf16.mxu0 0
    %560 = vmatpush1.bf16.msra.mxu0 0
    %561 = vmatprep.subr.bf16.mxu0 0
    %562 = vmatpush1.bf16.msra.mxu0 0
    %563 = vmatprep.subr.bf16.mxu0 0
    %564 = vmatpush1.bf16.msra.mxu0 0
    %565 = vmatprep.subr.bf16.mxu0 0
    %566 = vmatpush1.bf16.msra.mxu0 0
    %567 = vmatprep.subr.bf16.mxu0 0
    %568 = vmatpush1.bf16.msra.mxu0 0
    %569 = vmatprep.subr.bf16.mxu0 0
    %570 = vmatpush1.bf16.msra.mxu0 0
    %571 = vmatprep.subr.bf16.mxu0 0
    %572 = vmatpush1.bf16.msra.mxu0 0
    %573 = vmatprep.mubr.bf16.mxu0 0
    %574 = vmatmul.mubr.bf16.gmra.mrb[0].mxu0 %v535
    %v575 = vpop.f32.mrb[0].mxu0
    %v576 = vadd.f32 0.0, %v575
    %v577 = vpop.f32.mrb[0].mxu0
    %v578 = vpop.f32.mrb[0].mxu0
    %v579 = vpop.f32.mrb[0].mxu0
    %580 = vdwg.mxu0
    %v581 = vpack.c.bf16 %v576, %v576
    %v582 = vld [vmem:[%s7] sm:$0xf]
    %v583 = vld [vmem:[%s7 + $0x4] sm:$0xf]
    %v584 = vld [vmem:[%s7 + $0x8] sm:$0xf]
    %v585 = vld [vmem:[%s7 + $0xc] sm:$0xf]
    %v586 = vld [vmem:[%s7 + $0x10] sm:$0xf]
    %v587 = vld [vmem:[%s7 + $0x14] sm:$0xf]
    %v588 = vpack.c.bf16 %v332, %v332
    %v589 = vpack.c.bf16 %v398, %v398
    %v590 = vpack.c.bf16 %v464, %v464
    %v592 = vsel %vm473, %v588, 0
    %v595 = vsel %vm473, %v589, 0
    %597 = vmatprep.subr.bf16.mxu0 0
    %598 = vmatpush1.bf16.xpose.msra.mxu0 %v595
    %599 = vmatprep.subr.bf16.mxu0 0
    %600 = vmatpush1.bf16.xpose.msra.mxu0 0
    %601 = vmatprep.subr.bf16.mxu0 0
    %602 = vmatpush1.bf16.xpose.msra.mxu0 0
    %603 = vmatprep.subr.bf16.mxu0 0
    %604 = vmatpush1.bf16.xpose.msra.mxu0 0
    %605 = vmatprep.subr.bf16.mxu0 0
    %606 = vmatpush1.bf16.xpose.msra.mxu0 0
    %607 = vmatprep.subr.bf16.mxu0 0
    %608 = vmatpush1.bf16.xpose.msra.mxu0 0
    %609 = vmatprep.subr.bf16.mxu0 0
    %610 = vmatpush1.bf16.xpose.msra.mxu0 0
    %611 = vmatprep.subr.bf16.mxu0 0
    %612 = vmatpush1.bf16.xpose.msra.mxu0 0
    %613 = vmatprep.subr.bf16.mxu0 0
    %614 = vmatpush1.bf16.xpose.msra.mxu0 0
    %615 = vmatprep.subr.bf16.mxu0 0
    %616 = vmatpush1.bf16.xpose.msra.mxu0 0
    %617 = vmatprep.subr.bf16.mxu0 0
    %618 = vmatpush1.bf16.xpose.msra.mxu0 0
    %619 = vmatprep.subr.bf16.mxu0 0
    %620 = vmatpush1.bf16.xpose.msra.mxu0 0
    %621 = vmatprep.subr.bf16.mxu0 0
    %622 = vmatpush1.bf16.xpose.msra.mxu0 0
    %623 = vmatprep.subr.bf16.mxu0 0
    %624 = vmatpush1.bf16.xpose.msra.mxu0 0
    %625 = vmatprep.subr.bf16.mxu0 0
    %626 = vmatpush1.bf16.xpose.msra.mxu0 0
    %627 = vmatprep.subr.bf16.mxu0 0
    %628 = vmatpush1.bf16.xpose.msra.mxu0 0
    %629 = vmatprep.mubr.bf16.mxu0 0
    %630 = vmatmul.mubr.bf16.gmra.mrb[0].mxu0 %v592
    %v631 = vpop.f32.mrb[0].mxu0
    %v632 = vadd.f32 0.0, %v631
    %v633 = vpop.f32.mrb[0].mxu0
    %v634 = vpop.f32.mrb[0].mxu0
    %v635 = vpop.f32.mrb[0].mxu0
    %636 = vdwg.mxu0
    %v637 = vmul.f32 %v632, 0.14433756
    %v638 = vsel %vm521, %v637, -inf
    %639 = vmax.xlane.f32.xlu0 %v638
    %v640 = vpop.xlane.xlu0 %639
    %v641 = vsub.f32 %v637, %v640
    %v642 = vmul.f32 %v641, 1.442695
    %v643 = vpow.pop %v642
    %v644 = vsel %vm521, %v643, 0.0
    %645 = vadd.xlane.f32.xlu0 %v644
    %v646 = vpop.xlane.xlu0 %645
    %v647 = vrcp.pop %v646
    %v648 = vmul.f32 %v643, %v647
    %v649 = vpack.c.bf16 %v648, %v648
    %v651 = vsel %vm521, %v649, 0
    %v654 = vsel %vm537, %v590, 0
    %656 = vmatprep.subr.bf16.mxu0 0
    %657 = vmatpush1.bf16.msra.mxu0 %v654
    %658 = vmatprep.subr.bf16.mxu0 0
    %659 = vmatpush1.bf16.msra.mxu0 0
    %660 = vmatprep.subr.bf16.mxu0 0
    %661 = vmatpush1.bf16.msra.mxu0 0
    %662 = vmatprep.subr.bf16.mxu0 0
    %663 = vmatpush1.bf16.msra.mxu0 0
    %664 = vmatprep.subr.bf16.mxu0 0
    %665 = vmatpush1.bf16.msra.mxu0 0
    %666 = vmatprep.subr.bf16.mxu0 0
    %667 = vmatpush1.bf16.msra.mxu0 0
    %668 = vmatprep.subr.bf16.mxu0 0
    %669 = vmatpush1.bf16.msra.mxu0 0
    %670 = vmatprep.subr.bf16.mxu0 0
    %671 = vmatpush1.bf16.msra.mxu0 0
    %672 = vmatprep.subr.bf16.mxu0 0
    %673 = vmatpush1.bf16.msra.mxu0 0
    %674 = vmatprep.subr.bf16.mxu0 0
    %675 = vmatpush1.bf16.msra.mxu0 0
    %676 = vmatprep.subr.bf16.mxu0 0
    %677 = vmatpush1.bf16.msra.mxu0 0
    %678 = vmatprep.subr.bf16.mxu0 0
    %679 = vmatpush1.bf16.msra.mxu0 0
    %680 = vmatprep.subr.bf16.mxu0 0
    %681 = vmatpush1.bf16.msra.mxu0 0
    %682 = vmatprep.subr.bf16.mxu0 0
    %683 = vmatpush1.bf16.msra.mxu0 0
    %684 = vmatprep.subr.bf16.mxu0 0
    %685 = vmatpush1.bf16.msra.mxu0 0
    %686 = vmatprep.subr.bf16.mxu0 0
    %687 = vmatpush1.bf16.msra.mxu0 0
    %688 = vmatprep.mubr.bf16.mxu0 0
    %689 = vmatmul.mubr.bf16.gmra.mrb[0].mxu0 %v651
    %v690 = vpop.f32.mrb[0].mxu0
    %v691 = vadd.f32 0.0, %v690
    %v692 = vpop.f32.mrb[0].mxu0
    %v693 = vpop.f32.mrb[0].mxu0
    %v694 = vpop.f32.mrb[0].mxu0
    %695 = vdwg.mxu0
    %v696 = vpack.c.bf16 %v691, %v691
    %s697 = scalar_lea.vmem %s7, 24
    %v698 = vld [vmem:[%s697] sm:$0xf]
    %v699 = vld [vmem:[%s697 + $0x4] sm:$0xf]
    %v700 = vld [vmem:[%s697 + $0x8] sm:$0xf]
    %v701 = vld [vmem:[%s697 + $0xc] sm:$0xf]
    %v702 = vld [vmem:[%s697 + $0x10] sm:$0xf]
    %v703 = vld [vmem:[%s697 + $0x14] sm:$0xf]
    %v710 = vunpack.c.l.b16 %v698
    %v711 = vunpack.c.l.b16 %v699
    %v712 = vunpack.c.l.b16 %v700
    %v713 = vunpack.c.l.b16 %v701
    %v714 = vunpack.c.l.b16 %v702
    %v715 = vunpack.c.l.b16 %v703
    %v716 = vpack.c.b16 %v711, %v710
    %v717 = vpack.c.b16 %v713, %v712
    %v718 = vpack.c.b16 %v715, %v714
    %v723 = vsel %vm473, %v696, 0
    %725 = vmatprep.subr.bf16.mxu0 0
    %726 = vmatpush1.bf16.msra.mxu0 %v716
    %727 = vmatprep.subr.bf16.mxu0 0
    %728 = vmatpush1.bf16.msra.mxu0 %v717
    %729 = vmatprep.subr.bf16.mxu0 0
    %730 = vmatpush1.bf16.msra.mxu0 %v718
    %731 = vmatprep.subr.bf16.mxu0 0
    %732 = vmatpush1.bf16.msra.mxu0 0
    %733 = vmatprep.subr.bf16.mxu0 0
    %734 = vmatpush1.bf16.msra.mxu0 0
    %735 = vmatprep.subr.bf16.mxu0 0
    %736 = vmatpush1.bf16.msra.mxu0 0
    %737 = vmatprep.subr.bf16.mxu0 0
    %738 = vmatpush1.bf16.msra.mxu0 0
    %739 = vmatprep.subr.bf16.mxu0 0
    %740 = vmatpush1.bf16.msra.mxu0 0
    %741 = vmatprep.subr.bf16.mxu0 0
    %742 = vmatpush1.bf16.msra.mxu0 0
    %743 = vmatprep.subr.bf16.mxu0 0
    %744 = vmatpush1.bf16.msra.mxu0 0
    %745 = vmatprep.subr.bf16.mxu0 0
    %746 = vmatpush1.bf16.msra.mxu0 0
    %747 = vmatprep.subr.bf16.mxu0 0
    %748 = vmatpush1.bf16.msra.mxu0 0
    %749 = vmatprep.subr.bf16.mxu0 0
    %750 = vmatpush1.bf16.msra.mxu0 0
    %751 = vmatprep.subr.bf16.mxu0 0
    %752 = vmatpush1.bf16.msra.mxu0 0
    %753 = vmatprep.subr.bf16.mxu0 0
    %754 = vmatpush1.bf16.msra.mxu0 0
    %755 = vmatprep.subr.bf16.mxu0 0
    %756 = vmatpush1.bf16.msra.mxu0 0
    %757 = vmatprep.mubr.bf16.mxu0 0
    %758 = vmatmul.mubr.bf16.gmra.mrb[0].mxu0 %v723
    %v759 = vpop.f32.mrb[0].mxu0
    %v760 = vadd.f32 0.0, %v759
    %v761 = vpop.f32.mrb[0].mxu0
    %v762 = vpop.f32.mrb[0].mxu0
    %v763 = vpop.f32.mrb[0].mxu0
    %764 = vdwg.mxu0
    %v771 = vunpack.c.l.b16 %v582
    %v772 = vunpack.c.l.b16 %v583
    %v773 = vunpack.c.l.b16 %v584
    %v774 = vunpack.c.l.b16 %v585
    %v775 = vunpack.c.l.b16 %v586
    %v776 = vunpack.c.l.b16 %v587
    %v777 = vpack.c.b16 %v772, %v771
    %v778 = vpack.c.b16 %v774, %v773
    %v779 = vpack.c.b16 %v776, %v775
    %v784 = vsel %vm473, %v581, 0
    %786 = vmatprep.subr.bf16.mxu0 0
    %787 = vmatpush1.bf16.msra.mxu0 %v777
    %788 = vmatprep.subr.bf16.mxu0 0
    %789 = vmatpush1.bf16.msra.mxu0 %v778
    %790 = vmatprep.subr.bf16.mxu0 0
    %791 = vmatpush1.bf16.msra.mxu0 %v779
    %792 = vmatprep.subr.bf16.mxu0 0
    %793 = vmatpush1.bf16.msra.mxu0 0
    %794 = vmatprep.subr.bf16.mxu0 0
    %795 = vmatpush1.bf16.msra.mxu0 0
    %796 = vmatprep.subr.bf16.mxu0 0
    %797 = vmatpush1.bf16.msra.mxu0 0
    %798 = vmatprep.subr.bf16.mxu0 0
    %799 = vmatpush1.bf16.msra.mxu0 0
    %800 = vmatprep.subr.bf16.mxu0 0
    %801 = vmatpush1.bf16.msra.mxu0 0
    %802 = vmatprep.subr.bf16.mxu0 0
    %803 = vmatpush1.bf16.msra.mxu0 0
    %804 = vmatprep.subr.bf16.mxu0 0
    %805 = vmatpush1.bf16.msra.mxu0 0
    %806 = vmatprep.subr.bf16.mxu0 0
    %807 = vmatpush1.bf16.msra.mxu0 0
    %808 = vmatprep.subr.bf16.mxu0 0
    %809 = vmatpush1.bf16.msra.mxu0 0
    %810 = vmatprep.subr.bf16.mxu0 0
    %811 = vmatpush1.bf16.msra.mxu0 0
    %812 = vmatprep.subr.bf16.mxu0 0
    %813 = vmatpush1.bf16.msra.mxu0 0
    %814 = vmatprep.subr.bf16.mxu0 0
    %815 = vmatpush1.bf16.msra.mxu0 0
    %816 = vmatprep.subr.bf16.mxu0 0
    %817 = vmatpush1.bf16.msra.mxu0 0
    %818 = vmatprep.mubr.bf16.mxu0 0
    %819 = vmatmul.mubr.bf16.gmra.mrb[0].mxu0 %v784
    %v820 = vpop.f32.mrb[0].mxu0
    %v821 = vadd.f32 %v760, %v820
    %v822 = vpop.f32.mrb[0].mxu0
    %v823 = vpop.f32.mrb[0].mxu0
    %v824 = vpop.f32.mrb[0].mxu0
    %825 = vdwg.mxu0
    %v826 = vpack.c.bf16 %v141, %v141
    %v827 = vpack.c.bf16 %v205, %v205
    %v828 = vpack.c.bf16 %v269, %v269
    %v830 = vsel %vm473, %v826, 0
    %v833 = vsel %vm473, %v827, 0
    %835 = vmatprep.subr.bf16.mxu0 0
    %836 = vmatpush1.bf16.xpose.msra.mxu0 %v833
    %837 = vmatprep.subr.bf16.mxu0 0
    %838 = vmatpush1.bf16.xpose.msra.mxu0 0
    %839 = vmatprep.subr.bf16.mxu0 0
    %840 = vmatpush1.bf16.xpose.msra.mxu0 0
    %841 = vmatprep.subr.bf16.mxu0 0
    %842 = vmatpush1.bf16.xpose.msra.mxu0 0
    %843 = vmatprep.subr.bf16.mxu0 0
    %844 = vmatpush1.bf16.xpose.msra.mxu0 0
    %845 = vmatprep.subr.bf16.mxu0 0
    %846 = vmatpush1.bf16.xpose.msra.mxu0 0
    %847 = vmatprep.subr.bf16.mxu0 0
    %848 = vmatpush1.bf16.xpose.msra.mxu0 0
    %849 = vmatprep.subr.bf16.mxu0 0
    %850 = vmatpush1.bf16.xpose.msra.mxu0 0
    %851 = vmatprep.subr.bf16.mxu0 0
    %852 = vmatpush1.bf16.xpose.msra.mxu0 0
    %853 = vmatprep.subr.bf16.mxu0 0
    %854 = vmatpush1.bf16.xpose.msra.mxu0 0
    %855 = vmatprep.subr.bf16.mxu0 0
    %856 = vmatpush1.bf16.xpose.msra.mxu0 0
    %857 = vmatprep.subr.bf16.mxu0 0
    %858 = vmatpush1.bf16.xpose.msra.mxu0 0
    %859 = vmatprep.subr.bf16.mxu0 0
    %860 = vmatpush1.bf16.xpose.msra.mxu0 0
    %861 = vmatprep.subr.bf16.mxu0 0
    %862 = vmatpush1.bf16.xpose.msra.mxu0 0
    %863 = vmatprep.subr.bf16.mxu0 0
    %864 = vmatpush1.bf16.xpose.msra.mxu0 0
    %865 = vmatprep.subr.bf16.mxu0 0
    %866 = vmatpush1.bf16.xpose.msra.mxu0 0
    %867 = vmatprep.mubr.bf16.mxu0 0
    %868 = vmatmul.mubr.bf16.gmra.mrb[0].mxu0 %v830
    %v869 = vpop.f32.mrb[0].mxu0
    %v870 = vadd.f32 0.0, %v869
    %v871 = vpop.f32.mrb[0].mxu0
    %v872 = vpop.f32.mrb[0].mxu0
    %v873 = vpop.f32.mrb[0].mxu0
    %874 = vdwg.mxu0
    %v875 = vmul.f32 %v870, 0.14433756
    %v876 = vsel %vm521, %v875, -inf
    %877 = vmax.xlane.f32.xlu0 %v876
    %v878 = vpop.xlane.xlu0 %877
    %v879 = vsub.f32 %v875, %v878
    %v880 = vmul.f32 %v879, 1.442695
    %v881 = vpow.pop %v880
    %v882 = vsel %vm521, %v881, 0.0
    %883 = vadd.xlane.f32.xlu0 %v882
    %v884 = vpop.xlane.xlu0 %883
    %v885 = vrcp.pop %v884
    %v886 = vmul.f32 %v881, %v885
    %v887 = vpack.c.bf16 %v886, %v886
    %v889 = vsel %vm521, %v887, 0
    %v892 = vsel %vm537, %v828, 0
    %894 = vmatprep.subr.bf16.mxu0 0
    %895 = vmatpush1.bf16.msra.mxu0 %v892
    %896 = vmatprep.subr.bf16.mxu0 0
    %897 = vmatpush1.bf16.msra.mxu0 0
    %898 = vmatprep.subr.bf16.mxu0 0
    %899 = vmatpush1.bf16.msra.mxu0 0
    %900 = vmatprep.subr.bf16.mxu0 0
    %901 = vmatpush1.bf16.msra.mxu0 0
    %902 = vmatprep.subr.bf16.mxu0 0
    %903 = vmatpush1.bf16.msra.mxu0 0
    %904 = vmatprep.subr.bf16.mxu0 0
    %905 = vmatpush1.bf16.msra.mxu0 0
    %906 = vmatprep.subr.bf16.mxu0 0
    %907 = vmatpush1.bf16.msra.mxu0 0
    %908 = vmatprep.subr.bf16.mxu0 0
    %909 = vmatpush1.bf16.msra.mxu0 0
    %910 = vmatprep.subr.bf16.mxu0 0
    %911 = vmatpush1.bf16.msra.mxu0 0
    %912 = vmatprep.subr.bf16.mxu0 0
    %913 = vmatpush1.bf16.msra.mxu0 0
    %914 = vmatprep.subr.bf16.mxu0 0
    %915 = vmatpush1.bf16.msra.mxu0 0
    %916 = vmatprep.subr.bf16.mxu0 0
    %917 = vmatpush1.bf16.msra.mxu0 0
    %918 = vmatprep.subr.bf16.mxu0 0
    %919 = vmatpush1.bf16.msra.mxu0 0
    %920 = vmatprep.subr.bf16.mxu0 0
    %921 = vmatpush1.bf16.msra.mxu0 0
    %922 = vmatprep.subr.bf16.mxu0 0
    %923 = vmatpush1.bf16.msra.mxu0 0
    %924 = vmatprep.subr.bf16.mxu0 0
    %925 = vmatpush1.bf16.msra.mxu0 0
    %926 = vmatprep.mubr.bf16.mxu0 0
    %927 = vmatmul.mubr.bf16.gmra.mrb[0].mxu0 %v889
    %v928 = vpop.f32.mrb[0].mxu0
    %v929 = vadd.f32 0.0, %v928
    %v930 = vpop.f32.mrb[0].mxu0
    %v931 = vpop.f32.mrb[0].mxu0
    %v932 = vpop.f32.mrb[0].mxu0
    %933 = vdwg.mxu0
    %v934 = vpack.c.bf16 %v929, %v929
    %v935 = vpack.c.bf16 %v335, %v335
    %v936 = vpack.c.bf16 %v401, %v401
    %v937 = vpack.c.bf16 %v467, %v467
    %v939 = vsel %vm473, %v935, 0
    %v942 = vsel %vm473, %v936, 0
    %944 = vmatprep.subr.bf16.mxu0 0
    %945 = vmatpush1.bf16.xpose.msra.mxu0 %v942
    %946 = vmatprep.subr.bf16.mxu0 0
    %947 = vmatpush1.bf16.xpose.msra.mxu0 0
    %948 = vmatprep.subr.bf16.mxu0 0
    %949 = vmatpush1.bf16.xpose.msra.mxu0 0
    %950 = vmatprep.subr.bf16.mxu0 0
    %951 = vmatpush1.bf16.xpose.msra.mxu0 0
    %952 = vmatprep.subr.bf16.mxu0 0
    %953 = vmatpush1.bf16.xpose.msra.mxu0 0
    %954 = vmatprep.subr.bf16.mxu0 0
    %955 = vmatpush1.bf16.xpose.msra.mxu0 0
    %956 = vmatprep.subr.bf16.mxu0 0
    %957 = vmatpush1.bf16.xpose.msra.mxu0 0
    %958 = vmatprep.subr.bf16.mxu0 0
    %959 = vmatpush1.bf16.xpose.msra.mxu0 0
    %960 = vmatprep.subr.bf16.mxu0 0
    %961 = vmatpush1.bf16.xpose.msra.mxu0 0
    %962 = vmatprep.subr.bf16.mxu0 0
    %963 = vmatpush1.bf16.xpose.msra.mxu0 0
    %964 = vmatprep.subr.bf16.mxu0 0
    %965 = vmatpush1.bf16.xpose.msra.mxu0 0
    %966 = vmatprep.subr.bf16.mxu0 0
    %967 = vmatpush1.bf16.xpose.msra.mxu0 0
    %968 = vmatprep.subr.bf16.mxu0 0
    %969 = vmatpush1.bf16.xpose.msra.mxu0 0
    %970 = vmatprep.subr.bf16.mxu0 0
    %971 = vmatpush1.bf16.xpose.msra.mxu0 0
    %972 = vmatprep.subr.bf16.mxu0 0
    %973 = vmatpush1.bf16.xpose.msra.mxu0 0
    %974 = vmatprep.subr.bf16.mxu0 0
    %975 = vmatpush1.bf16.xpose.msra.mxu0 0
    %976 = vmatprep.mubr.bf16.mxu0 0
    %977 = vmatmul.mubr.bf16.gmra.mrb[0].mxu0 %v939
    %v978 = vpop.f32.mrb[0].mxu0
    %v979 = vadd.f32 0.0, %v978
    %v980 = vpop.f32.mrb[0].mxu0
    %v981 = vpop.f32.mrb[0].mxu0
    %v982 = vpop.f32.mrb[0].mxu0
    %983 = vdwg.mxu0
    %v984 = vmul.f32 %v979, 0.14433756
    %v985 = vsel %vm521, %v984, -inf
    %986 = vmax.xlane.f32.xlu0 %v985
    %v987 = vpop.xlane.xlu0 %986
    %v988 = vsub.f32 %v984, %v987
    %v989 = vmul.f32 %v988, 1.442695
    %v990 = vpow.pop %v989
    %v991 = vsel %vm521, %v990, 0.0
    %992 = vadd.xlane.f32.xlu0 %v991
    %v993 = vpop.xlane.xlu0 %992
    %v994 = vrcp.pop %v993
    %v995 = vmul.f32 %v990, %v994
    %v996 = vpack.c.bf16 %v995, %v995
    %v998 = vsel %vm521, %v996, 0
    %v1001 = vsel %vm537, %v937, 0
    %1003 = vmatprep.subr.bf16.mxu0 0
    %1004 = vmatpush1.bf16.msra.mxu0 %v1001
    %1005 = vmatprep.subr.bf16.mxu0 0
    %1006 = vmatpush1.bf16.msra.mxu0 0
    %1007 = vmatprep.subr.bf16.mxu0 0
    %1008 = vmatpush1.bf16.msra.mxu0 0
    %1009 = vmatprep.subr.bf16.mxu0 0
    %1010 = vmatpush1.bf16.msra.mxu0 0
    %1011 = vmatprep.subr.bf16.mxu0 0
    %1012 = vmatpush1.bf16.msra.mxu0 0
    %1013 = vmatprep.subr.bf16.mxu0 0
    %1014 = vmatpush1.bf16.msra.mxu0 0
    %1015 = vmatprep.subr.bf16.mxu0 0
    %1016 = vmatpush1.bf16.msra.mxu0 0
    %1017 = vmatprep.subr.bf16.mxu0 0
    %1018 = vmatpush1.bf16.msra.mxu0 0
    %1019 = vmatprep.subr.bf16.mxu0 0
    %1020 = vmatpush1.bf16.msra.mxu0 0
    %1021 = vmatprep.subr.bf16.mxu0 0
    %1022 = vmatpush1.bf16.msra.mxu0 0
    %1023 = vmatprep.subr.bf16.mxu0 0
    %1024 = vmatpush1.bf16.msra.mxu0 0
    %1025 = vmatprep.subr.bf16.mxu0 0
    %1026 = vmatpush1.bf16.msra.mxu0 0
    %1027 = vmatprep.subr.bf16.mxu0 0
    %1028 = vmatpush1.bf16.msra.mxu0 0
    %1029 = vmatprep.subr.bf16.mxu0 0
    %1030 = vmatpush1.bf16.msra.mxu0 0
    %1031 = vmatprep.subr.bf16.mxu0 0
    %1032 = vmatpush1.bf16.msra.mxu0 0
    %1033 = vmatprep.subr.bf16.mxu0 0
    %1034 = vmatpush1.bf16.msra.mxu0 0
    %1035 = vmatprep.mubr.bf16.mxu0 0
    %1036 = vmatmul.mubr.bf16.gmra.mrb[0].mxu0 %v998
    %v1037 = vpop.f32.mrb[0].mxu0
    %v1038 = vadd.f32 0.0, %v1037
    %v1039 = vpop.f32.mrb[0].mxu0
    %v1040 = vpop.f32.mrb[0].mxu0
    %v1041 = vpop.f32.mrb[0].mxu0
    %1042 = vdwg.mxu0
    %v1043 = vpack.c.bf16 %v1038, %v1038
    %v1045 = vsel %vm473, %v1043, 0
    %1047 = vmatprep.subr.bf16.mxu0 0
    %1048 = vmatpush1.bf16.msra.mxu0 %v716
    %1049 = vmatprep.subr.bf16.mxu0 0
    %1050 = vmatpush1.bf16.msra.mxu0 %v717
    %1051 = vmatprep.subr.bf16.mxu0 0
    %1052 = vmatpush1.bf16.msra.mxu0 %v718
    %1053 = vmatprep.subr.bf16.mxu0 0
    %1054 = vmatpush1.bf16.msra.mxu0 0
    %1055 = vmatprep.subr.bf16.mxu0 0
    %1056 = vmatpush1.bf16.msra.mxu0 0
    %1057 = vmatprep.subr.bf16.mxu0 0
    %1058 = vmatpush1.bf16.msra.mxu0 0
    %1059 = vmatprep.subr.bf16.mxu0 0
    %1060 = vmatpush1.bf16.msra.mxu0 0
    %1061 = vmatprep.subr.bf16.mxu0 0
    %1062 = vmatpush1.bf16.msra.mxu0 0
    %1063 = vmatprep.subr.bf16.mxu0 0
    %1064 = vmatpush1.bf16.msra.mxu0 0
    %1065 = vmatprep.subr.bf16.mxu0 0
    %1066 = vmatpush1.bf16.msra.mxu0 0
    %1067 = vmatprep.subr.bf16.mxu0 0
    %1068 = vmatpush1.bf16.msra.mxu0 0
    %1069 = vmatprep.subr.bf16.mxu0 0
    %1070 = vmatpush1.bf16.msra.mxu0 0
    %1071 = vmatprep.subr.bf16.mxu0 0
    %1072 = vmatpush1.bf16.msra.mxu0 0
    %1073 = vmatprep.subr.bf16.mxu0 0
    %1074 = vmatpush1.bf16.msra.mxu0 0
    %1075 = vmatprep.subr.bf16.mxu0 0
    %1076 = vmatpush1.bf16.msra.mxu0 0
    %1077 = vmatprep.subr.bf16.mxu0 0
    %1078 = vmatpush1.bf16.msra.mxu0 0
    %1079 = vmatprep.mubr.bf16.mxu0 0
    %1080 = vmatmul.mubr.bf16.gmra.mrb[0].mxu0 %v1045
    %v1081 = vpop.f32.mrb[0].mxu0
    %v1082 = vadd.f32 0.0, %v1081
    %v1083 = vpop.f32.mrb[0].mxu0
    %v1084 = vpop.f32.mrb[0].mxu0
    %v1085 = vpop.f32.mrb[0].mxu0
    %1086 = vdwg.mxu0
    %v1088 = vsel %vm473, %v934, 0
    %1090 = vmatprep.subr.bf16.mxu0 0
    %1091 = vmatpush1.bf16.msra.mxu0 %v777
    %1092 = vmatprep.subr.bf16.mxu0 0
    %1093 = vmatpush1.bf16.msra.mxu0 %v778
    %1094 = vmatprep.subr.bf16.mxu0 0
    %1095 = vmatpush1.bf16.msra.mxu0 %v779
    %1096 = vmatprep.subr.bf16.mxu0 0
    %1097 = vmatpush1.bf16.msra.mxu0 0
    %1098 = vmatprep.subr.bf16.mxu0 0
    %1099 = vmatpush1.bf16.msra.mxu0 0
    %1100 = vmatprep.subr.bf16.mxu0 0
    %1101 = vmatpush1.bf16.msra.mxu0 0
    %1102 = vmatprep.subr.bf16.mxu0 0
    %1103 = vmatpush1.bf16.msra.mxu0 0
    %1104 = vmatprep.subr.bf16.mxu0 0
    %1105 = vmatpush1.bf16.msra.mxu0 0
    %1106 = vmatprep.subr.bf16.mxu0 0
    %1107 = vmatpush1.bf16.msra.mxu0 0
    %1108 = vmatprep.subr.bf16.mxu0 0
    %1109 = vmatpush1.bf16.msra.mxu0 0
    %1110 = vmatprep.subr.bf16.mxu0 0
    %1111 = vmatpush1.bf16.msra.mxu0 0
    %1112 = vmatprep.subr.bf16.mxu0 0
    %1113 = vmatpush1.bf16.msra.mxu0 0
    %1114 = vmatprep.subr.bf16.mxu0 0
    %1115 = vmatpush1.bf16.msra.mxu0 0
    %1116 = vmatprep.subr.bf16.mxu0 0
    %1117 = vmatpush1.bf16.msra.mxu0 0
    %1118 = vmatprep.subr.bf16.mxu0 0
    %1119 = vmatpush1.bf16.msra.mxu0 0
    %1120 = vmatprep.subr.bf16.mxu0 0
    %1121 = vmatpush1.bf16.msra.mxu0 0
    %1122 = vmatprep.mubr.bf16.mxu0 0
    %1123 = vmatmul.mubr.bf16.gmra.mrb[0].mxu0 %v1088
    %v1124 = vpop.f32.mrb[0].mxu0
    %v1125 = vadd.f32 %v1082, %v1124
    %v1126 = vpop.f32.mrb[0].mxu0
    %v1127 = vpop.f32.mrb[0].mxu0
    %v1128 = vpop.f32.mrb[0].mxu0
    %1129 = vdwg.mxu0
    %v1130 = vadd.f32 %v46, %v821
    %v1131 = vadd.f32 %v47, %v1125
    %v1132 = vld [vmem:[%s8] sm:$0x1]
    %v1134 = vlaneseq
    %v1135 = vshrl.u32 %v1134, 7
    %v1136 = vsub.s32 0, %v1135
    %v1137 = vrot.slane %v1132, %v1136
    %v1139 = vadd.f32 %v1130, %v1137
    %v1140 = vadd.f32 %v1131, %v1137
    %v1141 = vsel %vm48, %v1139, 0.0
    %1142 = vadd.xlane.f32.xlu0 %v1141
    %v1143 = vpop.xlane.xlu0 %1142
    %v1144 = vsel %vm48, %v1140, 0.0
    %1145 = vadd.xlane.f32.xlu0 %v1144
    %v1146 = vpop.xlane.xlu0 %1145
    %v1147 = vmul.f32 %v1143, %v55
    %v1148 = vmul.f32 %v1146, %v55
    %v1149 = vsub.f32 %v1139, %v1147
    %v1150 = vsub.f32 %v1140, %v1148
    %v1151 = vmul.f32 %v1149, %v1149
    %v1152 = vmul.f32 %v1150, %v1150
    %v1153 = vsel %vm48, %v1151, 0.0
    %1154 = vadd.xlane.f32.xlu0 %v1153
    %v1155 = vpop.xlane.xlu0 %1154
    %v1156 = vsel %vm48, %v1152, 0.0
    %1157 = vadd.xlane.f32.xlu0 %v1156
    %v1158 = vpop.xlane.xlu0 %1157
    %v1159 = vmul.f32 %v1155, %v55
    %v1160 = vmul.f32 %v1158, %v55
    %v1161 = vadd.f32 %v1159, 1e-06
    %v1162 = vadd.f32 %v1160, 1e-06
    %v1163 = vrsqrt.pop %v1161
    %v1164 = vrsqrt.pop %v1162
    %v1165 = vmul.f32 %v1149, %v1163
    %v1166 = vmul.f32 %v1150, %v1164
    %v1167 = vpack.c.bf16 %v1166, %v1165
    %v1168 = vld [vmem:[%s9] sm:$0xf]
    %v1169 = vld [vmem:[%s9 + $0x4] sm:$0xf]
    %v1170 = vld [vmem:[%s9 + $0x8] sm:$0xf]
    %v1171 = vld [vmem:[%s9 + $0xc] sm:$0xf]
    %v1172 = vld [vmem:[%s10] sm:$0x1]
    %v1174 = vlaneseq
    %v1175 = vshrl.u32 %v1174, 7
    %v1176 = vsub.s32 0, %v1175
    %v1177 = vrot.slane %v1172, %v1176
    %v1183 = vunpack.c.l.b16 %v1168
    %v1184 = vunpack.c.l.b16 %v1169
    %v1185 = vunpack.c.l.b16 %v1170
    %v1186 = vunpack.c.l.b16 %v1171
    %v1187 = vpack.c.b16 %v1184, %v1183
    %v1188 = vpack.c.b16 %v1186, %v1185
    %v1192 = vsel %vm48, %v1167, 0
    %1194 = vmatprep.subr.bf16.mxu0 0
    %1195 = vmatpush1.bf16.msra.mxu0 %v1187
    %1196 = vmatprep.subr.bf16.mxu0 0
    %1197 = vmatpush1.bf16.msra.mxu0 %v1188
    %1198 = vmatprep.subr.bf16.mxu0 0
    %1199 = vmatpush1.bf16.msra.mxu0 0
    %1200 = vmatprep.subr.bf16.mxu0 0
    %1201 = vmatpush1.bf16.msra.mxu0 0
    %1202 = vmatprep.subr.bf16.mxu0 0
    %1203 = vmatpush1.bf16.msra.mxu0 0
    %1204 = vmatprep.subr.bf16.mxu0 0
    %1205 = vmatpush1.bf16.msra.mxu0 0
    %1206 = vmatprep.subr.bf16.mxu0 0
    %1207 = vmatpush1.bf16.msra.mxu0 0
    %1208 = vmatprep.subr.bf16.mxu0 0
    %1209 = vmatpush1.bf16.msra.mxu0 0
    %1210 = vmatprep.subr.bf16.mxu0 0
    %1211 = vmatpush1.bf16.msra.mxu0 0
    %1212 = vmatprep.subr.bf16.mxu0 0
    %1213 = vmatpush1.bf16.msra.mxu0 0
    %1214 = vmatprep.subr.bf16.mxu0 0
    %1215 = vmatpush1.bf16.msra.mxu0 0
    %1216 = vmatprep.subr.bf16.mxu0 0
    %1217 = vmatpush1.bf16.msra.mxu0 0
    %1218 = vmatprep.subr.bf16.mxu0 0
    %1219 = vmatpush1.bf16.msra.mxu0 0
    %1220 = vmatprep.subr.bf16.mxu0 0
    %1221 = vmatpush1.bf16.msra.mxu0 0
    %1222 = vmatprep.subr.bf16.mxu0 0
    %1223 = vmatpush1.bf16.msra.mxu0 0
    %1224 = vmatprep.subr.bf16.mxu0 0
    %1225 = vmatpush1.bf16.msra.mxu0 0
    %1226 = vmatprep.mubr.bf16.mxu0 0
    %1227 = vmatmul.mubr.bf16.gmra.mrb[0].mxu0 %v1192
    %v1228 = vpop.f32.mrb[0].mxu0
    %v1229 = vadd.f32 %v1177, %v1228
    %v1230 = vpop.f32.mrb[0].mxu0
    %v1231 = vpop.f32.mrb[0].mxu0
    %v1232 = vadd.f32 %v1177, %v1231
    %v1233 = vpop.f32.mrb[0].mxu0
    %1234 = vdwg.mxu0
    %v1235 = vmul.f32 %v1229, %v1229
    %v1236 = vmul.f32 %v1232, %v1232
    %v1237 = vmul.f32 %v1229, %v1235
    %v1238 = vmul.f32 %v1232, %v1236
    %v1239 = vmul.f32 %v1237, 0.044715
    %v1240 = vmul.f32 %v1238, 0.044715
    %v1241 = vadd.f32 %v1229, %v1239
    %v1242 = vadd.f32 %v1232, %v1240
    %v1243 = vmul.f32 %v1241, 0.7978846
    %v1244 = vmul.f32 %v1242, 0.7978846
    %v1245 = vtanh.pop %v1243
    %v1246 = vtanh.pop %v1244
    %v1247 = vadd.f32 %v1245, 1.0
    %v1248 = vadd.f32 %v1246, 1.0
    %v1249 = vmul.f32 %v1247, 0.5
    %v1250 = vmul.f32 %v1248, 0.5
    %v1251 = vmul.f32 %v1229, %v1249
    %v1252 = vmul.f32 %v1232, %v1250
    %v1253 = vpack.c.bf16 %v1252, %v1251
    %v1254 = vld [vmem:[%s11] sm:$0xf]
    %v1255 = vld [vmem:[%s11 + $0x4] sm:$0xf]
    %v1256 = vld [vmem:[%s11 + $0x8] sm:$0xf]
    %v1257 = vld [vmem:[%s11 + $0xc] sm:$0xf]
    %v1258 = vld [vmem:[%s11 + $0x10] sm:$0xf]
    %v1259 = vld [vmem:[%s11 + $0x14] sm:$0xf]
    %v1260 = vld [vmem:[%s11 + $0x18] sm:$0xf]
    %v1261 = vld [vmem:[%s11 + $0x1c] sm:$0xf]
    %v1262 = vld [vmem:[%s11 + $0x20] sm:$0xf]
    %v1263 = vld [vmem:[%s11 + $0x24] sm:$0xf]
    %v1264 = vld [vmem:[%s11 + $0x28] sm:$0xf]
    %v1265 = vld [vmem:[%s11 + $0x2c] sm:$0xf]
    %v1266 = vld [vmem:[%s11 + $0x30] sm:$0xf]
    %v1267 = vld [vmem:[%s11 + $0x34] sm:$0xf]
    %v1268 = vld [vmem:[%s11 + $0x38] sm:$0xf]
    %v1269 = vld [vmem:[%s11 + $0x3c] sm:$0xf]
    %v1270 = vld [vmem:[%s12] sm:$0x1]
    %v1272 = vlaneseq
    %v1273 = vshrl.u32 %v1272, 7
    %v1274 = vsub.s32 0, %v1273
    %v1275 = vrot.slane %v1270, %v1274
    %v1293 = vunpack.c.l.b16 %v1254
    %v1294 = vunpack.c.l.b16 %v1255
    %v1295 = vunpack.c.l.b16 %v1256
    %v1296 = vunpack.c.l.b16 %v1257
    %v1297 = vunpack.c.l.b16 %v1258
    %v1298 = vunpack.c.l.b16 %v1259
    %v1299 = vunpack.c.l.b16 %v1260
    %v1300 = vunpack.c.l.b16 %v1261
    %v1301 = vunpack.c.l.b16 %v1262
    %v1302 = vunpack.c.l.b16 %v1263
    %v1303 = vunpack.c.l.b16 %v1264
    %v1304 = vunpack.c.l.b16 %v1265
    %v1305 = vunpack.c.l.b16 %v1266
    %v1306 = vunpack.c.l.b16 %v1267
    %v1307 = vunpack.c.l.b16 %v1268
    %v1308 = vunpack.c.l.b16 %v1269
    %v1309 = vpack.c.b16 %v1294, %v1293
    %v1310 = vpack.c.b16 %v1296, %v1295
    %v1311 = vpack.c.b16 %v1298, %v1297
    %v1312 = vpack.c.b16 %v1300, %v1299
    %v1313 = vpack.c.b16 %v1302, %v1301
    %v1314 = vpack.c.b16 %v1304, %v1303
    %v1315 = vpack.c.b16 %v1306, %v1305
    %v1316 = vpack.c.b16 %v1308, %v1307
    %1325 = vmatprep.subr.bf16.mxu0 0
    %1326 = vmatpush1.bf16.msra.mxu0 %v1309
    %1327 = vmatprep.subr.bf16.mxu0 0
    %1328 = vmatpush1.bf16.msra.mxu0 %v1310
    %1329 = vmatprep.subr.bf16.mxu0 0
    %1330 = vmatpush1.bf16.msra.mxu0 %v1311
    %1331 = vmatprep.subr.bf16.mxu0 0
    %1332 = vmatpush1.bf16.msra.mxu0 %v1312
    %1333 = vmatprep.subr.bf16.mxu0 0
    %1334 = vmatpush1.bf16.msra.mxu0 %v1313
    %1335 = vmatprep.subr.bf16.mxu0 0
    %1336 = vmatpush1.bf16.msra.mxu0 %v1314
    %1337 = vmatprep.subr.bf16.mxu0 0
    %1338 = vmatpush1.bf16.msra.mxu0 %v1315
    %1339 = vmatprep.subr.bf16.mxu0 0
    %1340 = vmatpush1.bf16.msra.mxu0 %v1316
    %1341 = vmatprep.subr.bf16.mxu0 0
    %1342 = vmatpush1.bf16.msra.mxu0 0
    %1343 = vmatprep.subr.bf16.mxu0 0
    %1344 = vmatpush1.bf16.msra.mxu0 0
    %1345 = vmatprep.subr.bf16.mxu0 0
    %1346 = vmatpush1.bf16.msra.mxu0 0
    %1347 = vmatprep.subr.bf16.mxu0 0
    %1348 = vmatpush1.bf16.msra.mxu0 0
    %1349 = vmatprep.subr.bf16.mxu0 0
    %1350 = vmatpush1.bf16.msra.mxu0 0
    %1351 = vmatprep.subr.bf16.mxu0 0
    %1352 = vmatpush1.bf16.msra.mxu0 0
    %1353 = vmatprep.subr.bf16.mxu0 0
    %1354 = vmatpush1.bf16.msra.mxu0 0
    %1355 = vmatprep.subr.bf16.mxu0 0
    %1356 = vmatpush1.bf16.msra.mxu0 0
    %1357 = vmatprep.mubr.bf16.mxu0 0
    %1358 = vmatmul.mubr.bf16.gmra.mrb[0].mxu0 %v1253
    %v1359 = vpop.f32.mrb[0].mxu0
    %v1360 = vadd.f32 %v1275, %v1359
    %v1361 = vpop.f32.mrb[0].mxu0
    %v1362 = vpop.f32.mrb[0].mxu0
    %v1363 = vadd.f32 %v1275, %v1362
    %v1364 = vpop.f32.mrb[0].mxu0
    %1365 = vdwg.mxu0
    %v1366 = vadd.f32 %v1139, %v1360
    %v1367 = vadd.f32 %v1140, %v1363
    %1368 = vst.msk [vmem:[#allocation2] sm:$0xff] %vm48, %v1366
    %1369 = vst.msk [vmem:[#allocation2 + $0x8] sm:$0xff] %vm48, %v1367
    // Predicated region
    $region54: #{tpu_custom_call.1} parent=1 // pred_check
      _
    $region55: #{tpu_custom_call.1} parent=1 // pred_check_branch
      %1371 = sbr.rel (0) target = $region57
    $region56: #{tpu_custom_call.1} parent=1 // pred_region
      %s1373 = ssub.s32 256, 256
      %1374 = vsyncadd [#allocation3], %s1373
      %s1375 = sshll.u32 [#allocation2], 4
      %s1376 = int_to_ptr.vmem [resolvable:$true] %s1375
      %1381 = dma.vmem_to_hbm [thread:$0]  %s1376, 256, %s13, [#allocation3], 128, 128, 8
    $region57: #{tpu_custom_call.1} parent=1 // pred_fallthru
      _
    // Predicated region
    $region58: #{tpu_custom_call.1} parent=1 // pred_check
      _
    $region59: #{tpu_custom_call.1} parent=1 // pred_check_branch
      %1383 = sbr.rel (0) target = $region61
    $region60: #{tpu_custom_call.1} parent=1 // pred_region
      %1384 = dma.done [#allocation3], 256
    $region61: #{tpu_custom_call.1} parent=1 // pred_fallthru
      _
    %1385 = vsyncpa [#allocation3], 1

</llo_original>
